<compile_context>
chip_gen: v5e
topology: v5e:2x2
jax: 0.10.0
libtpu: 0.0.40
codegen_flags: <defaults>
</compile_context>

<pallas_src>
import functools

import jax
import jax.numpy as jnp
from jax.experimental import pallas as pl
from jax.experimental.pallas import tpu as pltpu


def _round_up(v, m):
    return (v + m - 1) // m * m


def _pick_row_tile(hout, wout, target_rows=128):
    """Pick a divisor of Hout whose tile row-count th*Wout is closest to target_rows.

    Using an exact divisor keeps every tile full -> BN partial statistics need no masking."""
    best, best_gap = 1, None
    for th in range(1, hout + 1):
        if hout % th == 0:
            gap = abs(th * wout - target_rows)
            if best_gap is None or gap <= best_gap:  # <= prefers the larger tile on ties
                best, best_gap = th, gap
    return best


def _vmem_limit(bytes_needed):
    """Request VMEM based on the real footprint, never the whole per-core VMEM (v7x has 64 MiB)."""
    cap = 64 * 1024 * 1024
    try:
        cap = int(getattr(pltpu.get_tpu_info(), "vmem_capacity_bytes", cap))
    except Exception:
        pass
    return int(min(max(int(bytes_needed), 32 * 1024 * 1024), (cap * 3) // 4))


def _conv_bn_stats_kernel(x_ref, w_ref, y_ref, stats_ref, *,
                          kh_sz, kw_sz, stride, th, wout, cp):
    """One (image n, output-row-tile i) grid step.

    In-kernel im2col: for each of the KH*KW taps, slice the shifted window out of the
    VMEM-resident padded image and matmul it against that tap's (Cin, Cp) weight slab,
    accumulating in f32.  Emit the conv tile as bf16 plus exact per-tile BN partials
    (sum and mean-centered M2) for a Chan-style merge on the host."""
    i = pl.program_id(1)
    h0 = pl.multiple_of(i * (th * stride), th * stride)

    acc = None
    for kidx in range(kh_sz * kw_sz):
        kh, kw = kidx // kw_sz, kidx % kw_sz
        if stride == 1:
            win = x_ref[0, pl.ds(h0 + kh, th), pl.ds(kw, wout), :]
        else:
            win = x_ref[0, pl.ds(h0 + kh, th, stride), pl.ds(kw, wout, stride), :]
        lhs = win.reshape(th * wout, win.shape[-1])
        part = jnp.dot(lhs, w_ref[kidx], preferred_element_type=jnp.float32)
        acc = part if acc is None else acc + part

    # bf16 intermediate -> halves pass-1 writeback and pass-2 read traffic.
    y_ref[...] = acc.reshape(1, th, wout, cp).astype(y_ref.dtype)

    # Exact per-tile partials (stats are taken from the f32 accumulator, before the bf16 cast).
    cnt = th * wout
    s = jnp.sum(acc, axis=0, keepdims=True)            # (1, Cp)
    mu = s * (1.0 / cnt)
    d = acc - mu
    stats_ref[0, 0:1, :] = s
    stats_ref[0, 1:2, :] = jnp.sum(d * d, axis=0, keepdims=True)


def _bn_apply_kernel(y_ref, scale_ref, shift_ref, o_ref):
    """o = y * scale + shift, f32 math, lane-dense Cp-wide stores."""
    y = y_ref[...].astype(jnp.float32)
    o_ref[...] = (y * scale_ref[...] + shift_ref[...]).astype(o_ref.dtype)


def conv_block_forward(x_nchw, weight, gamma, beta, *, stride=1, padding=1,
                       eps=1e-5, target_rows=128):
    """Conv2d(bias=False) + BatchNorm2d(train mode) via two Pallas kernels.

    x_nchw: [N, Cin, H, W]   weight: [Cout, Cin, KH, KW]   gamma/beta: [Cout]
    Returns: [N, Cout, Hout, Wout] (float32)
    """
    N, Cin, H, W = x_nchw.shape
    Cout, _, KH, KW = weight.shape
    Hout = (H + 2 * padding - KH) // stride + 1
    Wout = (W + 2 * padding - KW) // stride + 1
    Hp, Wp = H + 2 * padding, W + 2 * padding

    # Lane alignment: 128, or 256 for large Cout to fill the 256-wide v6e/v7x MXU.
    lane = 256 if Cout > 128 else 128
    Cp = _round_up(Cout, lane)

    th = _pick_row_tile(Hout, Wout, target_rows)   # exact divisor of Hout -> no masking
    Ht = Hout // th

    # ---- host glue (no im2col expansion): NCHW -> padded NHWC bf16, once ----
    x = jnp.transpose(x_nchw, (0, 2, 3, 1)).astype(jnp.bfloat16)
    xp = jnp.pad(x, ((0, 0), (padding, padding), (padding, padding), (0, 0)))

    # weight -> (KH*KW, Cin, Cp) bf16, kept fully VMEM-resident in pass 1.
    w = jnp.transpose(weight, (2, 3, 1, 0)).reshape(KH * KW, Cin, Cout)
    w = jnp.zeros((KH * KW, Cin, Cp), jnp.bfloat16).at[:, :, :Cout].set(
        w.astype(jnp.bfloat16))

    kernel1 = functools.partial(_conv_bn_stats_kernel, kh_sz=KH, kw_sz=KW,
                                stride=stride, th=th, wout=Wout, cp=Cp)

    x_bytes = Hp * Wp * Cin * 2
    w_bytes = KH * KW * Cin * Cp * 2
    y_tile_bytes = th * Wout * Cp * 2
    acc_bytes = th * Wout * Cp * 4
    vmem1 = _vmem_limit(2 * (x_bytes + w_bytes + y_tile_bytes + 2 * Cp * 4)
                        + 3 * acc_bytes + (4 << 20))

    # ---- pass 1: conv (in-kernel im2col) + per-tile BN partial statistics ----
    y_bf16, stats = pl.pallas_call(
        kernel1,
        grid=(N, Ht),
        in_specs=[
            # one padded image; index_map ignores the row-tile axis -> resident across it
            pl.BlockSpec((1, Hp, Wp, Cin), lambda n, i: (n, 0, 0, 0)),
            # weight fully VMEM-resident (fetched once)
            pl.BlockSpec((KH * KW, Cin, Cp), lambda n, i: (0, 0, 0)),
        ],
        out_specs=[
            pl.BlockSpec((1, th, Wout, Cp), lambda n, i: (n, i, 0, 0)),
            pl.BlockSpec((1, 2, Cp), lambda n, i: (n * Ht + i, 0, 0)),
        ],
        out_shape=[
            jax.ShapeDtypeStruct((N, Hout, Wout, Cp), jnp.bfloat16),
            jax.ShapeDtypeStruct((N * Ht, 2, Cp), jnp.float32),
        ],
        compiler_params=pltpu.CompilerParams(
            dimension_semantics=("parallel", "parallel"),
            vmem_limit_bytes=vmem1,
        ),
        cost_estimate=pl.CostEstimate(
            flops=2 * N * Hout * Wout * KH * KW * Cin * Cp,
            transcendentals=0,
            bytes_accessed=N * x_bytes + w_bytes
                           + N * Hout * Wout * Cp * 2 + N * Ht * 2 * Cp * 4,
        ),
    )(xp, w)

    # ---- host glue: Chan parallel-variance merge + fold gamma/beta into scale/shift ----
    M = N * Hout * Wout
    cnt = th * Wout
    sums = stats[:, 0, :]                       # (T, Cp)
    m2s = stats[:, 1, :]                        # (T, Cp)
    mean = jnp.sum(sums, axis=0) / M
    tile_mean = sums / cnt
    var = (jnp.sum(m2s, axis=0)
           + cnt * jnp.sum((tile_mean - mean[None, :]) ** 2, axis=0)) / M
    var = jnp.maximum(var, 0.0)
    inv = jax.lax.rsqrt(var + eps)
    gamma_p = jnp.zeros((Cp,), jnp.float32).at[:Cout].set(gamma.astype(jnp.float32))
    beta_p = jnp.zeros((Cp,), jnp.float32).at[:Cout].set(beta.astype(jnp.float32))
    scale = (gamma_p * inv).reshape(1, 1, 1, Cp)
    shift = (beta_p - mean * gamma_p * inv).reshape(1, 1, 1, Cp)

    # ---- pass 2: normalize (bf16 read, f32 math, lane-dense stores) ----
    vmem2 = _vmem_limit(2 * (y_tile_bytes + th * Wout * Cp * 4) + 4 * Cp * 4 + (4 << 20))
    out = pl.pallas_call(
        _bn_apply_kernel,
        grid=(N, Ht),
        in_specs=[
            pl.BlockSpec((1, th, Wout, Cp), lambda n, i: (n, i, 0, 0)),
            pl.BlockSpec((1, 1, 1, Cp), lambda n, i: (0, 0, 0, 0)),   # VMEM-resident
            pl.BlockSpec((1, 1, 1, Cp), lambda n, i: (0, 0, 0, 0)),
        ],
        out_specs=pl.BlockSpec((1, th, Wout, Cp), lambda n, i: (n, i, 0, 0)),
        out_shape=jax.ShapeDtypeStruct((N, Hout, Wout, Cp), jnp.float32),
        compiler_params=pltpu.CompilerParams(
            dimension_semantics=("parallel", "parallel"),
            vmem_limit_bytes=vmem2,
        ),
        cost_estimate=pl.CostEstimate(
            flops=2 * M * Cp,
            transcendentals=0,
            bytes_accessed=M * Cp * 2 + M * Cp * 4 + 4 * Cp * 4,
        ),
    )(y_bf16, scale, shift)

    # glue: drop channel padding, back to NCHW f32 (PyTorch ConvBlock output layout/dtype)
    return jnp.transpose(out[:, :, :, :Cout], (0, 3, 1, 2))


def _reference(x_nchw, weight, gamma, beta, *, stride=1, padding=1, eps=1e-5):
    """Pure-JAX reference (bf16-quantized conv operands + training-mode BN in f32)."""
    xq = x_nchw.astype(jnp.bfloat16).astype(jnp.float32)
    wq = weight.astype(jnp.bfloat16).astype(jnp.float32)
    y = jax.lax.conv_general_dilated(
        xq, wq, window_strides=(stride, stride),
        padding=[(padding, padding), (padding, padding)],
        dimension_numbers=("NCHW", "OIHW", "NCHW"),
        precision=jax.lax.Precision.HIGHEST,
    )
    mean = jnp.mean(y, axis=(0, 2, 3), keepdims=True)
    var = jnp.mean((y - mean) ** 2, axis=(0, 2, 3), keepdims=True)
    g = gamma.reshape(1, -1, 1, 1).astype(jnp.float32)
    b = beta.reshape(1, -1, 1, 1).astype(jnp.float32)
    return (y - mean) * jax.lax.rsqrt(var + eps) * g + b


if __name__ == "__main__":
    # Small shapes consistent with the module's ConvBlock: batch=2, in_channels=4,
    # spatial=16x16, out_channels=8, kernel_size=3, stride=1, padding=1.
    N, Cin, H, W = 2, 4, 16, 16
    Cout, K = 8, 3

    key = jax.random.PRNGKey(0)
    kx, kw, kg, kb = jax.random.split(key, 4)
    x = jax.random.normal(kx, (N, Cin, H, W), dtype=jnp.float32)
    weight = jax.random.normal(kw, (Cout, Cin, K, K), dtype=jnp.float32) * 0.1
    gamma = 1.0 + 0.1 * jax.random.normal(kg, (Cout,), dtype=jnp.float32)
    beta = 0.1 * jax.random.normal(kb, (Cout,), dtype=jnp.float32)

    out = conv_block_forward(x, weight, gamma, beta, stride=1, padding=1)
    out = jax.block_until_ready(out)

    ref = _reference(x, weight, gamma, beta, stride=1, padding=1)
    assert out.shape == (N, Cout, H, W)
    # Tolerance accounts for the bf16 intermediate (pass-1 -> pass-2) and bf16 MXU operands.
    assert jnp.allclose(out, ref, atol=2e-2, rtol=2e-2), "mismatch vs reference"

    print("KERNEL_OK")
</pallas_src>

<mosaic_0001>
module attributes {stable_mosaic.version = 11 : i64} {
  func.func @_conv_bn_stats_kernel(%arg0: i32, %arg1: i32, %arg2: memref<1x18x18x4xbf16, #tpu.memory_space<vmem>>, %arg3: memref<9x4x128xbf16, #tpu.memory_space<vmem>>, %arg4: memref<1x8x16x128xbf16, #tpu.memory_space<vmem>>, %arg5: memref<1x2x128xf32, #tpu.memory_space<vmem>>) attributes {dimension_semantics = [#tpu.dimension_semantics<parallel>, #tpu.dimension_semantics<parallel>], iteration_bounds = array<i64: 2, 2>, scalar_prefetch = 0 : i64, scratch_operands = 0 : i64, tpu.core_type = #tpu.core_type<tc>, window_params = [{transform_indices = @transform_0, window_bounds = array<i64: 1, 18, 18, 4>}, {pipeline_mode = #tpu.pipeline_mode<synchronous>, transform_indices = @transform_1, window_bounds = array<i64: 9, 4, 128>}, {transform_indices = @transform_2, window_bounds = array<i64: 1, 8, 16, 128>}, {transform_indices = @transform_3, window_bounds = array<i64: 1, 2, 128>}]} {
    %c8_i32 = arith.constant 8 : i32
    %0 = arith.muli %arg1, %c8_i32 : i32
    %1 = tpu.assume_multiple %0, 8 : i32
    %c0_i32 = arith.constant 0 : i32
    %2 = arith.addi %1, %c0_i32 : i32
    %c0 = arith.constant 0 : index
    %3 = arith.index_cast %2 : i32 to index
    %c0_0 = arith.constant 0 : index
    %c0_1 = arith.constant 0 : index
    %4 = vector.load %arg2[%c0, %3, %c0_0, %c0_1] : memref<1x18x18x4xbf16, #tpu.memory_space<vmem>>, vector<1x8x16x4xbf16>
    %5 = vector.shape_cast %4 : vector<1x8x16x4xbf16> to vector<8x16x4xbf16>
    %6 = vector.shape_cast %5 : vector<8x16x4xbf16> to vector<128x4xbf16>
    %c0_2 = arith.constant 0 : index
    %c0_3 = arith.constant 0 : index
    %c0_4 = arith.constant 0 : index
    %7 = vector.load %arg3[%c0_2, %c0_3, %c0_4] : memref<9x4x128xbf16, #tpu.memory_space<vmem>>, vector<1x4x128xbf16>
    %8 = vector.shape_cast %7 : vector<1x4x128xbf16> to vector<4x128xbf16>
    %cst = arith.constant dense<0.000000e+00> : vector<128x128xf32>
    %9 = tpu.matmul %6, %8, %cst {dimension_numbers = #tpu.dot_dimension_numbers<[1], [0], [0], [1], [0, 0, 1, 1], [], []>} : vector<128x4xbf16>, vector<4x128xbf16>, vector<128x128xf32> -> vector<128x128xf32>
    %c0_i32_5 = arith.constant 0 : i32
    %10 = arith.addi %1, %c0_i32_5 : i32
    %c0_6 = arith.constant 0 : index
    %11 = arith.index_cast %10 : i32 to index
    %c1 = arith.constant 1 : index
    %c0_7 = arith.constant 0 : index
    %12 = vector.load %arg2[%c0_6, %11, %c1, %c0_7] : memref<1x18x18x4xbf16, #tpu.memory_space<vmem>>, vector<1x8x16x4xbf16>
    %13 = vector.shape_cast %12 : vector<1x8x16x4xbf16> to vector<8x16x4xbf16>
    %14 = vector.shape_cast %13 : vector<8x16x4xbf16> to vector<128x4xbf16>
    %c1_8 = arith.constant 1 : index
    %c0_9 = arith.constant 0 : index
    %c0_10 = arith.constant 0 : index
    %15 = vector.load %arg3[%c1_8, %c0_9, %c0_10] : memref<9x4x128xbf16, #tpu.memory_space<vmem>>, vector<1x4x128xbf16>
    %16 = vector.shape_cast %15 : vector<1x4x128xbf16> to vector<4x128xbf16>
    %cst_11 = arith.constant dense<0.000000e+00> : vector<128x128xf32>
    %17 = tpu.matmul %14, %16, %cst_11 {dimension_numbers = #tpu.dot_dimension_numbers<[1], [0], [0], [1], [0, 0, 1, 1], [], []>} : vector<128x4xbf16>, vector<4x128xbf16>, vector<128x128xf32> -> vector<128x128xf32>
    %18 = arith.addf %9, %17 : vector<128x128xf32>
    %c0_i32_12 = arith.constant 0 : i32
    %19 = arith.addi %1, %c0_i32_12 : i32
    %c0_13 = arith.constant 0 : index
    %20 = arith.index_cast %19 : i32 to index
    %c2 = arith.constant 2 : index
    %c0_14 = arith.constant 0 : index
    %21 = vector.load %arg2[%c0_13, %20, %c2, %c0_14] : memref<1x18x18x4xbf16, #tpu.memory_space<vmem>>, vector<1x8x16x4xbf16>
    %22 = vector.shape_cast %21 : vector<1x8x16x4xbf16> to vector<8x16x4xbf16>
    %23 = vector.shape_cast %22 : vector<8x16x4xbf16> to vector<128x4xbf16>
    %c2_15 = arith.constant 2 : index
    %c0_16 = arith.constant 0 : index
    %c0_17 = arith.constant 0 : index
    %24 = vector.load %arg3[%c2_15, %c0_16, %c0_17] : memref<9x4x128xbf16, #tpu.memory_space<vmem>>, vector<1x4x128xbf16>
    %25 = vector.shape_cast %24 : vector<1x4x128xbf16> to vector<4x128xbf16>
    %cst_18 = arith.constant dense<0.000000e+00> : vector<128x128xf32>
    %26 = tpu.matmul %23, %25, %cst_18 {dimension_numbers = #tpu.dot_dimension_numbers<[1], [0], [0], [1], [0, 0, 1, 1], [], []>} : vector<128x4xbf16>, vector<4x128xbf16>, vector<128x128xf32> -> vector<128x128xf32>
    %27 = arith.addf %18, %26 : vector<128x128xf32>
    %c1_i32 = arith.constant 1 : i32
    %28 = arith.addi %1, %c1_i32 : i32
    %c0_19 = arith.constant 0 : index
    %29 = arith.index_cast %28 : i32 to index
    %c0_20 = arith.constant 0 : index
    %c0_21 = arith.constant 0 : index
    %30 = vector.load %arg2[%c0_19, %29, %c0_20, %c0_21] : memref<1x18x18x4xbf16, #tpu.memory_space<vmem>>, vector<1x8x16x4xbf16>
    %31 = vector.shape_cast %30 : vector<1x8x16x4xbf16> to vector<8x16x4xbf16>
    %32 = vector.shape_cast %31 : vector<8x16x4xbf16> to vector<128x4xbf16>
    %c3 = arith.constant 3 : index
    %c0_22 = arith.constant 0 : index
    %c0_23 = arith.constant 0 : index
    %33 = vector.load %arg3[%c3, %c0_22, %c0_23] : memref<9x4x128xbf16, #tpu.memory_space<vmem>>, vector<1x4x128xbf16>
    %34 = vector.shape_cast %33 : vector<1x4x128xbf16> to vector<4x128xbf16>
    %cst_24 = arith.constant dense<0.000000e+00> : vector<128x128xf32>
    %35 = tpu.matmul %32, %34, %cst_24 {dimension_numbers = #tpu.dot_dimension_numbers<[1], [0], [0], [1], [0, 0, 1, 1], [], []>} : vector<128x4xbf16>, vector<4x128xbf16>, vector<128x128xf32> -> vector<128x128xf32>
    %36 = arith.addf %27, %35 : vector<128x128xf32>
    %c1_i32_25 = arith.constant 1 : i32
    %37 = arith.addi %1, %c1_i32_25 : i32
    %c0_26 = arith.constant 0 : index
    %38 = arith.index_cast %37 : i32 to index
    %c1_27 = arith.constant 1 : index
    %c0_28 = arith.constant 0 : index
    %39 = vector.load %arg2[%c0_26, %38, %c1_27, %c0_28] : memref<1x18x18x4xbf16, #tpu.memory_space<vmem>>, vector<1x8x16x4xbf16>
    %40 = vector.shape_cast %39 : vector<1x8x16x4xbf16> to vector<8x16x4xbf16>
    %41 = vector.shape_cast %40 : vector<8x16x4xbf16> to vector<128x4xbf16>
    %c4 = arith.constant 4 : index
    %c0_29 = arith.constant 0 : index
    %c0_30 = arith.constant 0 : index
    %42 = vector.load %arg3[%c4, %c0_29, %c0_30] : memref<9x4x128xbf16, #tpu.memory_space<vmem>>, vector<1x4x128xbf16>
    %43 = vector.shape_cast %42 : vector<1x4x128xbf16> to vector<4x128xbf16>
    %cst_31 = arith.constant dense<0.000000e+00> : vector<128x128xf32>
    %44 = tpu.matmul %41, %43, %cst_31 {dimension_numbers = #tpu.dot_dimension_numbers<[1], [0], [0], [1], [0, 0, 1, 1], [], []>} : vector<128x4xbf16>, vector<4x128xbf16>, vector<128x128xf32> -> vector<128x128xf32>
    %45 = arith.addf %36, %44 : vector<128x128xf32>
    %c1_i32_32 = arith.constant 1 : i32
    %46 = arith.addi %1, %c1_i32_32 : i32
    %c0_33 = arith.constant 0 : index
    %47 = arith.index_cast %46 : i32 to index
    %c2_34 = arith.constant 2 : index
    %c0_35 = arith.constant 0 : index
    %48 = vector.load %arg2[%c0_33, %47, %c2_34, %c0_35] : memref<1x18x18x4xbf16, #tpu.memory_space<vmem>>, vector<1x8x16x4xbf16>
    %49 = vector.shape_cast %48 : vector<1x8x16x4xbf16> to vector<8x16x4xbf16>
    %50 = vector.shape_cast %49 : vector<8x16x4xbf16> to vector<128x4xbf16>
    %c5 = arith.constant 5 : index
    %c0_36 = arith.constant 0 : index
    %c0_37 = arith.constant 0 : index
    %51 = vector.load %arg3[%c5, %c0_36, %c0_37] : memref<9x4x128xbf16, #tpu.memory_space<vmem>>, vector<1x4x128xbf16>
    %52 = vector.shape_cast %51 : vector<1x4x128xbf16> to vector<4x128xbf16>
    %cst_38 = arith.constant dense<0.000000e+00> : vector<128x128xf32>
    %53 = tpu.matmul %50, %52, %cst_38 {dimension_numbers = #tpu.dot_dimension_numbers<[1], [0], [0], [1], [0, 0, 1, 1], [], []>} : vector<128x4xbf16>, vector<4x128xbf16>, vector<128x128xf32> -> vector<128x128xf32>
    %54 = arith.addf %45, %53 : vector<128x128xf32>
    %c2_i32 = arith.constant 2 : i32
    %55 = arith.addi %1, %c2_i32 : i32
    %c0_39 = arith.constant 0 : index
    %56 = arith.index_cast %55 : i32 to index
    %c0_40 = arith.constant 0 : index
    %c0_41 = arith.constant 0 : index
    %57 = vector.load %arg2[%c0_39, %56, %c0_40, %c0_41] : memref<1x18x18x4xbf16, #tpu.memory_space<vmem>>, vector<1x8x16x4xbf16>
    %58 = vector.shape_cast %57 : vector<1x8x16x4xbf16> to vector<8x16x4xbf16>
    %59 = vector.shape_cast %58 : vector<8x16x4xbf16> to vector<128x4xbf16>
    %c6 = arith.constant 6 : index
    %c0_42 = arith.constant 0 : index
    %c0_43 = arith.constant 0 : index
    %60 = vector.load %arg3[%c6, %c0_42, %c0_43] : memref<9x4x128xbf16, #tpu.memory_space<vmem>>, vector<1x4x128xbf16>
    %61 = vector.shape_cast %60 : vector<1x4x128xbf16> to vector<4x128xbf16>
    %cst_44 = arith.constant dense<0.000000e+00> : vector<128x128xf32>
    %62 = tpu.matmul %59, %61, %cst_44 {dimension_numbers = #tpu.dot_dimension_numbers<[1], [0], [0], [1], [0, 0, 1, 1], [], []>} : vector<128x4xbf16>, vector<4x128xbf16>, vector<128x128xf32> -> vector<128x128xf32>
    %63 = arith.addf %54, %62 : vector<128x128xf32>
    %c2_i32_45 = arith.constant 2 : i32
    %64 = arith.addi %1, %c2_i32_45 : i32
    %c0_46 = arith.constant 0 : index
    %65 = arith.index_cast %64 : i32 to index
    %c1_47 = arith.constant 1 : index
    %c0_48 = arith.constant 0 : index
    %66 = vector.load %arg2[%c0_46, %65, %c1_47, %c0_48] : memref<1x18x18x4xbf16, #tpu.memory_space<vmem>>, vector<1x8x16x4xbf16>
    %67 = vector.shape_cast %66 : vector<1x8x16x4xbf16> to vector<8x16x4xbf16>
    %68 = vector.shape_cast %67 : vector<8x16x4xbf16> to vector<128x4xbf16>
    %c7 = arith.constant 7 : index
    %c0_49 = arith.constant 0 : index
    %c0_50 = arith.constant 0 : index
    %69 = vector.load %arg3[%c7, %c0_49, %c0_50] : memref<9x4x128xbf16, #tpu.memory_space<vmem>>, vector<1x4x128xbf16>
    %70 = vector.shape_cast %69 : vector<1x4x128xbf16> to vector<4x128xbf16>
    %cst_51 = arith.constant dense<0.000000e+00> : vector<128x128xf32>
    %71 = tpu.matmul %68, %70, %cst_51 {dimension_numbers = #tpu.dot_dimension_numbers<[1], [0], [0], [1], [0, 0, 1, 1], [], []>} : vector<128x4xbf16>, vector<4x128xbf16>, vector<128x128xf32> -> vector<128x128xf32>
    %72 = arith.addf %63, %71 : vector<128x128xf32>
    %c2_i32_52 = arith.constant 2 : i32
    %73 = arith.addi %1, %c2_i32_52 : i32
    %c0_53 = arith.constant 0 : index
    %74 = arith.index_cast %73 : i32 to index
    %c2_54 = arith.constant 2 : index
    %c0_55 = arith.constant 0 : index
    %75 = vector.load %arg2[%c0_53, %74, %c2_54, %c0_55] : memref<1x18x18x4xbf16, #tpu.memory_space<vmem>>, vector<1x8x16x4xbf16>
    %76 = vector.shape_cast %75 : vector<1x8x16x4xbf16> to vector<8x16x4xbf16>
    %77 = vector.shape_cast %76 : vector<8x16x4xbf16> to vector<128x4xbf16>
    %c8 = arith.constant 8 : index
    %c0_56 = arith.constant 0 : index
    %c0_57 = arith.constant 0 : index
    %78 = vector.load %arg3[%c8, %c0_56, %c0_57] : memref<9x4x128xbf16, #tpu.memory_space<vmem>>, vector<1x4x128xbf16>
    %79 = vector.shape_cast %78 : vector<1x4x128xbf16> to vector<4x128xbf16>
    %cst_58 = arith.constant dense<0.000000e+00> : vector<128x128xf32>
    %80 = tpu.matmul %77, %79, %cst_58 {dimension_numbers = #tpu.dot_dimension_numbers<[1], [0], [0], [1], [0, 0, 1, 1], [], []>} : vector<128x4xbf16>, vector<4x128xbf16>, vector<128x128xf32> -> vector<128x128xf32>
    %81 = arith.addf %72, %80 : vector<128x128xf32>
    %82 = vector.shape_cast %81 : vector<128x128xf32> to vector<1x8x16x128xf32>
    %83 = arith.truncf %82 : vector<1x8x16x128xf32> to vector<1x8x16x128xbf16>
    %c0_59 = arith.constant 0 : index
    %c0_60 = arith.constant 0 : index
    %c0_61 = arith.constant 0 : index
    %c0_62 = arith.constant 0 : index
    %84 = vector.load %arg4[%c0_59, %c0_60, %c0_61, %c0_62] : memref<1x8x16x128xbf16, #tpu.memory_space<vmem>>, vector<1x8x16x128xbf16>
    tpu.vector_store %arg4[%c0_59, %c0_60, %c0_61, %c0_62], %83 {strides = array<i32>} : memref<1x8x16x128xbf16, #tpu.memory_space<vmem>>, vector<1x8x16x128xbf16>,
    %cst_63 = arith.constant dense<0.000000e+00> : vector<128xf32>
    %85 = vector.multi_reduction <add>, %81, %cst_63 [0] : vector<128x128xf32> to vector<128xf32>
    %86 = vector.shape_cast %85 : vector<128xf32> to vector<1x128xf32>
    %cst_64 = arith.constant 7.812500e-03 : f32
    %87 = vector.broadcast %cst_64 : f32 to vector<1x128xf32>
    %88 = arith.mulf %86, %87 : vector<1x128xf32>
    %89 = vector.broadcast %88 : vector<1x128xf32> to vector<128x128xf32>
    %90 = arith.subf %81, %89 : vector<128x128xf32>
    %c0_65 = arith.constant 0 : index
    %c0_66 = arith.constant 0 : index
    %c0_67 = arith.constant 0 : index
    %91 = vector.load %arg5[%c0_65, %c0_66, %c0_67] : memref<1x2x128xf32, #tpu.memory_space<vmem>>, vector<1x1x128xf32>
    %92 = vector.shape_cast %91 : vector<1x1x128xf32> to vector<1x128xf32>
    %93 = vector.shape_cast %86 : vector<1x128xf32> to vector<1x1x128xf32>
    tpu.vector_store %arg5[%c0_65, %c0_66, %c0_67], %93 {strides = array<i32>} : memref<1x2x128xf32, #tpu.memory_space<vmem>>, vector<1x1x128xf32>,
    %94 = arith.mulf %90, %90 : vector<128x128xf32>
    %cst_68 = arith.constant dense<0.000000e+00> : vector<128xf32>
    %95 = vector.multi_reduction <add>, %94, %cst_68 [0] : vector<128x128xf32> to vector<128xf32>
    %96 = vector.shape_cast %95 : vector<128xf32> to vector<1x128xf32>
    %c0_69 = arith.constant 0 : index
    %c1_70 = arith.constant 1 : index
    %c0_71 = arith.constant 0 : index
    %97 = vector.load %arg5[%c0_69, %c1_70, %c0_71] : memref<1x2x128xf32, #tpu.memory_space<vmem>>, vector<1x1x128xf32>
    %98 = vector.shape_cast %97 : vector<1x1x128xf32> to vector<1x128xf32>
    %99 = vector.shape_cast %96 : vector<1x128xf32> to vector<1x1x128xf32>
    tpu.vector_store %arg5[%c0_69, %c1_70, %c0_71], %99 {strides = array<i32>} : memref<1x2x128xf32, #tpu.memory_space<vmem>>, vector<1x1x128xf32>,
    return
  }
  func.func @transform_0(%arg0: i32, %arg1: i32) -> (i32, i32, i32, i32) {
    %c0_i32 = arith.constant 0 : i32
    %c0_i32_0 = arith.constant 0 : i32
    %c0_i32_1 = arith.constant 0 : i32
    %c0_i32_2 = arith.constant 0 : i32
    return %arg0, %c0_i32, %c0_i32_0, %c0_i32_1 : i32, i32, i32, i32
  }
  func.func @transform_1(%arg0: i32, %arg1: i32) -> (i32, i32, i32) {
    %c0_i32 = arith.constant 0 : i32
    %c0_i32_0 = arith.constant 0 : i32
    %c0_i32_1 = arith.constant 0 : i32
    %c0_i32_2 = arith.constant 0 : i32
    return %c0_i32, %c0_i32_0, %c0_i32_1 : i32, i32, i32
  }
  func.func @transform_2(%arg0: i32, %arg1: i32) -> (i32, i32, i32, i32) {
    %c0_i32 = arith.constant 0 : i32
    %c0_i32_0 = arith.constant 0 : i32
    %c0_i32_1 = arith.constant 0 : i32
    return %arg0, %arg1, %c0_i32, %c0_i32_0 : i32, i32, i32, i32
  }
  func.func @transform_3(%arg0: i32, %arg1: i32) -> (i32, i32, i32) {
    %c2_i32 = arith.constant 2 : i32
    %0 = arith.muli %arg0, %c2_i32 : i32
    %1 = arith.addi %0, %arg1 : i32
    %c0_i32 = arith.constant 0 : i32
    %c0_i32_0 = arith.constant 0 : i32
    %c0_i32_1 = arith.constant 0 : i32
    return %1, %c0_i32, %c0_i32_0 : i32, i32, i32
  }
}

</mosaic_0001>

<llo_original>
// kernel: tpu_custom_call.1
$region0: #{tpu_custom_call.1}
  #allocation0 [shape = 'u32[]', space=smem, size = 0x4, offset = 0x4, fixed_abs, tag = 'smem constant byte address 0x4 - core index']
  #allocation1 [shape = 'u32[72,128]{1,0:T(1,128)}', space=vmem, size = 0x9000, scoped, tag = 'internal scratch']
  %s0 = inlined_call_operand.vmem [shape: bf16[2,18,18,4], index: 0, kind: input, shape index: {}]
  %s1 = inlined_call_operand.vmem [shape: bf16[9,4,128], index: 1, kind: input, shape index: {}]
  %s2 = inlined_call_operand.hbm [shape: bf16[2,16,16,128], index: 2, kind: output, shape index: {0}]
  %s3 = inlined_call_operand.hbm [shape: f32[4,2,128], index: 3, kind: output, shape index: {1}]
  %4 = xla_tuple %s2, %s3
  %s5 = sld [smem:[#allocation0]]
  $region49: #{tpu_custom_call.1} parent=0
    _
  %s7 = ssub.s32 1, %s5
  %s8 = scalar_select 0, %s7, %s5
  $region1: #{tpu_custom_call.1} parent=0
    #allocation2 [shape = 'u8[65536]{0}', space=vmem, size = 0x10000, scoped, tag = 'output window, operand 0']
    #allocation3 [shape = 's32[2]{0}', space=sflag, size = 0x8, scoped, tag = 'scoped memory for tpu_custom_call.1']
    #allocation4 [shape = 'u8[2048]{0}', space=vmem, size = 0x800, scoped, tag = 'output window, operand 1']
    #allocation5 [shape = 's32[2]{0}', space=sflag, size = 0x8, scoped, tag = 'scoped memory for tpu_custom_call.1']
    %9 = vsyncpa [#allocation3], 0
    %s10 = scalar_lea.sflag [#allocation3], 1
    %11 = vsyncpa %s10, 0
    %12 = vsyncpa [#allocation5], 0
    %s13 = scalar_lea.sflag [#allocation5], 1
    %14 = vsyncpa %s13, 0
    loop: start=0, step=1, limit=6
    $region2: #{tpu_custom_call.1} parent=1 // loop_pre_header
      _
    $region3: #{tpu_custom_call.1} parent=1 // loop_header
      %s16 = sphi 0, %s20
      %p17 = scmp.ge.s32.totalorder %s16, 6
      %s23 = sphi 0, %s35
      %s24 = sphi 0, %s31
      %s25 = sphi 0, %s23
      %s26 = sphi 0, %s24
      %s27 = sphi 0, %s25
      %s28 = sphi 0, %s26
      %s38 = sphi 0, %s40
      %s41 = sphi 0, %s38
      %s42 = sphi 0, %s41
      %s58 = sphi 0, %s42
      %s62 = sphi 0, %s62
      %s64 = sphi 0, %s62
      %s65 = sphi 0, %s64
      %s79 = sphi 0, %s65
      %s87 = sphi 0, %s89
      %s90 = sphi 0, %s87
      %s91 = sphi 0, %s90
      %s107 = sphi 0, %s91
      %s117 = sphi 0, %s119
      %s120 = sphi 0, %s117
      %s121 = sphi 0, %s120
      %s137 = sphi 0, %s121
    $region4: #{tpu_custom_call.1} parent=1 // loop_header_branch
      %19 = sbr.rel (%p17) target = $region8
    $region5: #{tpu_custom_call.1} parent=1 // loop_body
      %s21 = ssub.s32 %s16, 1
      %s22 = ssub.s32 %s16, 2
      %s29 = sadd.s32 1, %s24
      %p30 = scmp.ge.s32.totalorder %s29, 2
      %s31 = scalar_select %p30, 0, %s29
      %s32 = sadd.s32 1, %s23
      %s33 = scalar_select %p30, %s32, %s23
      %p34 = scmp.ge.s32.totalorder %s33, 2
      %s35 = scalar_select %p34, 0, %s33
      %s36 = ssub.s32 %s23, %s35
      %p37 = scmp.eq.s32.totalorder %s36, 0
      %s39 = sadd.s32 %s38, 1
      %s40 = scalar_select %p37, %s38, %s39
      %p43 = pneg %p37
      %p44 = scmp.eq.s32.totalorder %s16, 3
      %p45 = por %p43, %p44
      %p46 = scmp.ne.s32.totalorder %s38, %s41
      %p47 = scmp.eq.s32.totalorder %s16, 0
      %p48 = por %p46, %p47
      %p49 = scmp.ne.s32.totalorder %s38, %s41
      %p50 = scmp.eq.s32.totalorder %s21, 3
      %p51 = por %p49, %p50
      %p52 = scmp.ne.s32.totalorder %s41, %s42
      %p53 = scmp.eq.s32.totalorder %s21, 0
      %p54 = por %p52, %p53
      %p55 = scmp.ne.s32.totalorder %s41, %s42
      %p56 = scmp.eq.s32.totalorder %s22, 3
      %p57 = por %p55, %p56
      %p59 = scmp.ne.s32.totalorder %s42, %s58
      %p60 = scmp.eq.s32.totalorder %s22, 0
      %p61 = por %p59, %p60
      %s63 = sadd.s32 %s62, 1
      %p66 = scmp.eq.s32.totalorder %s16, 3
      %p67 = scmp.ne.s32.totalorder %s62, %s64
      %p68 = scmp.eq.s32.totalorder %s16, 0
      %p69 = por %p67, %p68
      %p70 = scmp.ne.s32.totalorder %s62, %s64
      %p71 = scmp.eq.s32.totalorder %s21, 3
      %p72 = por %p70, %p71
      %p73 = scmp.ne.s32.totalorder %s64, %s65
      %p74 = scmp.eq.s32.totalorder %s21, 0
      %p75 = por %p73, %p74
      %p76 = scmp.ne.s32.totalorder %s64, %s65
      %p77 = scmp.eq.s32.totalorder %s22, 3
      %p78 = por %p76, %p77
      %p80 = scmp.ne.s32.totalorder %s65, %s79
      %p81 = scmp.eq.s32.totalorder %s22, 0
      %p82 = por %p80, %p81
      %s83 = ssub.s32 %s23, %s35
      %s84 = ssub.s32 %s24, %s31
      %s85 = sor.u32 %s83, %s84
      %p86 = scmp.eq.s32.totalorder %s85, 0
      %s88 = sadd.s32 %s87, 1
      %s89 = scalar_select %p86, %s87, %s88
      %p92 = pneg %p86
      %p93 = scmp.eq.s32.totalorder %s16, 3
      %p94 = por %p92, %p93
      %p95 = scmp.ne.s32.totalorder %s87, %s90
      %p96 = scmp.eq.s32.totalorder %s16, 0
      %p97 = por %p95, %p96
      %p98 = scmp.ne.s32.totalorder %s87, %s90
      %p99 = scmp.eq.s32.totalorder %s21, 3
      %p100 = por %p98, %p99
      %p101 = scmp.ne.s32.totalorder %s90, %s91
      %p102 = scmp.eq.s32.totalorder %s21, 0
      %p103 = por %p101, %p102
      %p104 = scmp.ne.s32.totalorder %s90, %s91
      %p105 = scmp.eq.s32.totalorder %s22, 3
      %p106 = por %p104, %p105
      %p108 = scmp.ne.s32.totalorder %s91, %s107
      %p109 = scmp.eq.s32.totalorder %s22, 0
      %p110 = por %p108, %p109
      %s111 = smul.u32 %s23, 2
      %s112 = sadd.s32 %s111, %s24
      %s113 = smul.u32 %s35, 2
      %s114 = sadd.s32 %s113, %s31
      %s115 = ssub.s32 %s112, %s114
      %p116 = scmp.eq.s32.totalorder %s115, 0
      %s118 = sadd.s32 %s117, 1
      %s119 = scalar_select %p116, %s117, %s118
      %p122 = pneg %p116
      %p123 = scmp.eq.s32.totalorder %s16, 3
      %p124 = por %p122, %p123
      %p125 = scmp.ne.s32.totalorder %s117, %s120
      %p126 = scmp.eq.s32.totalorder %s16, 0
      %p127 = por %p125, %p126
      %p128 = scmp.ne.s32.totalorder %s117, %s120
      %p129 = scmp.eq.s32.totalorder %s21, 3
      %p130 = por %p128, %p129
      %p131 = scmp.ne.s32.totalorder %s120, %s121
      %p132 = scmp.eq.s32.totalorder %s21, 0
      %p133 = por %p131, %p132
      %p134 = scmp.ne.s32.totalorder %s120, %s121
      %p135 = scmp.eq.s32.totalorder %s22, 3
      %p136 = por %p134, %p135
      %p138 = scmp.ne.s32.totalorder %s121, %s137
      %p139 = scmp.eq.s32.totalorder %s22, 0
      %p140 = por %p138, %p139
      %p141 = scmp.le.s32.totalorder 1, %s16
      %p142 = scmp.lt.s32.totalorder %s16, 5
      %p143 = pnand %p141, %p142
      %p144 = pneg %p143
      // Predicated region
      $region9: #{tpu_custom_call.1} parent=5 // pred_check
        _
      $region10: #{tpu_custom_call.1} parent=5 // pred_check_branch
        %146 = sbr.rel (%p143) target = $region12
      $region11: #{tpu_custom_call.1} parent=5 // pred_region
        %s147 = ssub.s32 %s16, 1
        // Predicated region
        $region13: #{tpu_custom_call.1} parent=11 // pred_check
          %p148 = pneg %p75
        $region14: #{tpu_custom_call.1} parent=11 // pred_check_branch
          %150 = sbr.rel (%p148) target = $region16
        $region15: #{tpu_custom_call.1} parent=11 // pred_region
          _
        $region16: #{tpu_custom_call.1} parent=11 // pred_fallthru
          _
      $region12: #{tpu_custom_call.1} parent=5 // pred_fallthru
        _
      %p151 = scmp.lt.s32.totalorder %s16, 4
      // Predicated region
      $region17: #{tpu_custom_call.1} parent=5 // pred_check
        %p152 = pneg %p151
      $region18: #{tpu_custom_call.1} parent=5 // pred_check_branch
        %154 = sbr.rel (%p152) target = $region20
      $region19: #{tpu_custom_call.1} parent=5 // pred_region
        // Predicated region
        $region21: #{tpu_custom_call.1} parent=19 // pred_check
          %p155 = pneg %p48
        $region22: #{tpu_custom_call.1} parent=19 // pred_check_branch
          %157 = sbr.rel (%p155) target = $region24
        $region23: #{tpu_custom_call.1} parent=19 // pred_region
          %p158 = scmp.lt.s32.totalorder %s23, 1
          %s159 = scalar_select %p158, %s23, 1
          %s160 = smul.addr %s159, 54
          %s161 = smul.addr %s160, 4
          %s162 = scalar_lea.vmem %s0, %s161
        $region24: #{tpu_custom_call.1} parent=19 // pred_fallthru
          _
      $region20: #{tpu_custom_call.1} parent=5 // pred_fallthru
        _
      %p163 = scmp.le.s32.totalorder 1, %s16
      %p164 = scmp.lt.s32.totalorder %s16, 5
      %p165 = pnand %p163, %p164
      %p166 = pneg %p165
      // Predicated region
      $region25: #{tpu_custom_call.1} parent=5 // pred_check
        _
      $region26: #{tpu_custom_call.1} parent=5 // pred_check_branch
        %168 = sbr.rel (%p165) target = $region28
      $region27: #{tpu_custom_call.1} parent=5 // pred_region
        %s169 = ssub.s32 %s16, 1
        %p170 = scmp.lt.s32.totalorder %s25, 1
        %s171 = scalar_select %p170, %s25, 1
        %s172 = smul.addr %s171, 54
        %s173 = smul.addr %s172, 4
        %s174 = scalar_lea.vmem %s0, %s173
        %p175 = pneg %p54
        %p176 = pneg %p51
        %p177 = pneg %p75
        %p178 = pneg %p72
        %p179 = pneg %p103
        %p180 = pneg %p100
        %s181 = sand.u32 %s90, 1
        %s182 = scalar_lea.sflag [#allocation3], %s181
        %s183 = sand.u32 %s90, 1
        %s184 = smul.addr %s183, 64
        %s185 = scalar_lea.vmem [#allocation2], %s184
        %p186 = pneg %p133
        %p187 = pneg %p130
        %s188 = sand.u32 %s120, 1
        %s189 = scalar_lea.sflag [#allocation5], %s188
        %s190 = sand.u32 %s120, 1
        %s191 = smul.addr %s190, 2
        %s192 = scalar_lea.vmem [#allocation4], %s191
        %p193 = scmp.lt.s32.totalorder %s25, 1
        %s194 = scalar_select %p193, %s25, 1
        %s195 = smul.addr %s194, 54
        %s196 = smul.addr %s195, 4
        %s197 = scalar_lea.vmem %s0, %s196
        %s198 = smul.u32 8, %s26
        %s199 = smul.u32 %s25, 2
        %s200 = sadd.s32 %s199, %s26
        %s202 = smul.u32 %s26, 8
        %s203 = smul.u32 %s202, 3
        %s204 = smul.addr %s203, 4
        %s205 = scalar_lea.vmem %s197, %s204
        %v206 = vld [vmem:[%s205] sm:$0xf]
        %v207 = vld [vmem:[%s205 + $0x4] sm:$0xf]
        %v208 = vld [vmem:[%s205 + $0xc] sm:$0xf]
        %v209 = vld [vmem:[%s205 + $0x10] sm:$0xf]
        %v210 = vld [vmem:[%s205 + $0x18] sm:$0xf]
        %v211 = vld [vmem:[%s205 + $0x1c] sm:$0xf]
        %v212 = vld [vmem:[%s205 + $0x24] sm:$0xf]
        %v213 = vld [vmem:[%s205 + $0x28] sm:$0xf]
        %v214 = vld [vmem:[%s205 + $0x30] sm:$0xf]
        %v215 = vld [vmem:[%s205 + $0x34] sm:$0xf]
        %v216 = vld [vmem:[%s205 + $0x3c] sm:$0xf]
        %v217 = vld [vmem:[%s205 + $0x40] sm:$0xf]
        %v218 = vld [vmem:[%s205 + $0x48] sm:$0xf]
        %v219 = vld [vmem:[%s205 + $0x4c] sm:$0xf]
        %v220 = vld [vmem:[%s205 + $0x54] sm:$0xf]
        %v221 = vld [vmem:[%s205 + $0x58] sm:$0xf]
        %v222 = vld [vmem:[%s1] sm:$0x3]
        %v223 = vld [vmem:[%s205 + $0x8] sm:$0x1]
        %v224 = vld [vmem:[%s205 + $0x14] sm:$0x1]
        %v225 = vld [vmem:[%s205 + $0x20] sm:$0x1]
        %v226 = vld [vmem:[%s205 + $0x2c] sm:$0x1]
        %v227 = vld [vmem:[%s205 + $0x38] sm:$0x1]
        %v228 = vld [vmem:[%s205 + $0x44] sm:$0x1]
        %v229 = vld [vmem:[%s205 + $0x50] sm:$0x1]
        %v230 = vld [vmem:[%s205 + $0x5c] sm:$0x1]
        %vm231 = vsmask.f32 3328
        %vm232 = vsmask.f32 7440
        %vm233 = vmor %vm231, %vm232
        %v235 = vshrl.u32 %v206, 16
        %v237 = vrot.slane %v235, 4
        %v238 = vshll.u32 %v206, 16
        %v240 = vrot.slane %v238, 5
        %v241 = vor.u32 %v237, %v240
        %v242 = vrot.slane %v241, 4
        %v244 = vshll.u32 %v207, 16
        %v246 = vrot.slane %v244, 5
        %v247 = vsel %vm233, %v242, %v246
        %v248 = vshrl.u32 %v207, 16
        %v250 = vrot.slane %v248, 4
        %v251 = vor.u32 %v250, %v246
        %v252 = vrot.slane %v251, 4
        %v254 = vshll.u32 %v223, 16
        %v256 = vrot.slane %v254, 5
        %v257 = vsel %vm233, %v252, %v256
        %v259 = vshrl.u32 %v208, 16
        %v261 = vrot.slane %v259, 4
        %v262 = vshll.u32 %v208, 16
        %v264 = vrot.slane %v262, 5
        %v265 = vor.u32 %v261, %v264
        %v266 = vrot.slane %v265, 4
        %v268 = vshll.u32 %v209, 16
        %v270 = vrot.slane %v268, 5
        %v271 = vsel %vm233, %v266, %v270
        %v272 = vshrl.u32 %v209, 16
        %v274 = vrot.slane %v272, 4
        %v275 = vor.u32 %v274, %v270
        %v276 = vrot.slane %v275, 4
        %v278 = vshll.u32 %v224, 16
        %v280 = vrot.slane %v278, 5
        %v281 = vsel %vm233, %v276, %v280
        %v283 = vshrl.u32 %v210, 16
        %v285 = vrot.slane %v283, 4
        %v286 = vshll.u32 %v210, 16
        %v288 = vrot.slane %v286, 5
        %v289 = vor.u32 %v285, %v288
        %v290 = vrot.slane %v289, 4
        %v292 = vshll.u32 %v211, 16
        %v294 = vrot.slane %v292, 5
        %v295 = vsel %vm233, %v290, %v294
        %v296 = vshrl.u32 %v211, 16
        %v298 = vrot.slane %v296, 4
        %v299 = vor.u32 %v298, %v294
        %v300 = vrot.slane %v299, 4
        %v302 = vshll.u32 %v225, 16
        %v304 = vrot.slane %v302, 5
        %v305 = vsel %vm233, %v300, %v304
        %v307 = vshrl.u32 %v212, 16
        %v309 = vrot.slane %v307, 4
        %v310 = vshll.u32 %v212, 16
        %v312 = vrot.slane %v310, 5
        %v313 = vor.u32 %v309, %v312
        %v314 = vrot.slane %v313, 4
        %v316 = vshll.u32 %v213, 16
        %v318 = vrot.slane %v316, 5
        %v319 = vsel %vm233, %v314, %v318
        %v320 = vshrl.u32 %v213, 16
        %v322 = vrot.slane %v320, 4
        %v323 = vor.u32 %v322, %v318
        %v324 = vrot.slane %v323, 4
        %v326 = vshll.u32 %v226, 16
        %v328 = vrot.slane %v326, 5
        %v329 = vsel %vm233, %v324, %v328
        %v331 = vshrl.u32 %v214, 16
        %v333 = vrot.slane %v331, 4
        %v334 = vshll.u32 %v214, 16
        %v336 = vrot.slane %v334, 5
        %v337 = vor.u32 %v333, %v336
        %v338 = vrot.slane %v337, 4
        %v340 = vshll.u32 %v215, 16
        %v342 = vrot.slane %v340, 5
        %v343 = vsel %vm233, %v338, %v342
        %v344 = vshrl.u32 %v215, 16
        %v346 = vrot.slane %v344, 4
        %v347 = vor.u32 %v346, %v342
        %v348 = vrot.slane %v347, 4
        %v350 = vshll.u32 %v227, 16
        %v352 = vrot.slane %v350, 5
        %v353 = vsel %vm233, %v348, %v352
        %v355 = vshrl.u32 %v216, 16
        %v357 = vrot.slane %v355, 4
        %v358 = vshll.u32 %v216, 16
        %v360 = vrot.slane %v358, 5
        %v361 = vor.u32 %v357, %v360
        %v362 = vrot.slane %v361, 4
        %v364 = vshll.u32 %v217, 16
        %v366 = vrot.slane %v364, 5
        %v367 = vsel %vm233, %v362, %v366
        %v368 = vshrl.u32 %v217, 16
        %v370 = vrot.slane %v368, 4
        %v371 = vor.u32 %v370, %v366
        %v372 = vrot.slane %v371, 4
        %v374 = vshll.u32 %v228, 16
        %v376 = vrot.slane %v374, 5
        %v377 = vsel %vm233, %v372, %v376
        %v379 = vshrl.u32 %v218, 16
        %v381 = vrot.slane %v379, 4
        %v382 = vshll.u32 %v218, 16
        %v384 = vrot.slane %v382, 5
        %v385 = vor.u32 %v381, %v384
        %v386 = vrot.slane %v385, 4
        %v388 = vshll.u32 %v219, 16
        %v390 = vrot.slane %v388, 5
        %v391 = vsel %vm233, %v386, %v390
        %v392 = vshrl.u32 %v219, 16
        %v394 = vrot.slane %v392, 4
        %v395 = vor.u32 %v394, %v390
        %v396 = vrot.slane %v395, 4
        %v398 = vshll.u32 %v229, 16
        %v400 = vrot.slane %v398, 5
        %v401 = vsel %vm233, %v396, %v400
        %v403 = vshrl.u32 %v220, 16
        %v405 = vrot.slane %v403, 4
        %v406 = vshll.u32 %v220, 16
        %v408 = vrot.slane %v406, 5
        %v409 = vor.u32 %v405, %v408
        %v410 = vrot.slane %v409, 4
        %v412 = vshll.u32 %v221, 16
        %v414 = vrot.slane %v412, 5
        %v415 = vsel %vm233, %v410, %v414
        %v416 = vshrl.u32 %v221, 16
        %v418 = vrot.slane %v416, 4
        %v419 = vor.u32 %v418, %v414
        %v420 = vrot.slane %v419, 4
        %v422 = vshll.u32 %v230, 16
        %v424 = vrot.slane %v422, 5
        %v425 = vsel %vm233, %v420, %v424
        %s426 = scalar_lea.vmem %s1, 2
        %v427 = vld [vmem:[%s426] sm:$0x3]
        %v428 = vunpack.c.l.b16 %v247
        %v429 = vunpack.c.l.b16 %v257
        %v430 = vunpack.c.l.b16 %v271
        %v431 = vunpack.c.l.b16 %v281
        %v432 = vunpack.c.l.b16 %v295
        %v433 = vunpack.c.l.b16 %v305
        %v434 = vunpack.c.l.b16 %v319
        %v435 = vunpack.c.l.b16 %v329
        %v436 = vunpack.c.l.b16 %v343
        %v437 = vunpack.c.l.b16 %v353
        %v438 = vunpack.c.l.b16 %v367
        %v439 = vunpack.c.l.b16 %v377
        %v440 = vunpack.c.l.b16 %v391
        %v441 = vunpack.c.l.b16 %v401
        %v442 = vunpack.c.l.b16 %v415
        %v443 = vunpack.c.l.b16 %v425
        %v444 = vpack.c.b16 %v429, %v428
        %v445 = vpack.c.b16 %v431, %v430
        %v446 = vpack.c.b16 %v433, %v432
        %v447 = vpack.c.b16 %v435, %v434
        %v448 = vpack.c.b16 %v437, %v436
        %v449 = vpack.c.b16 %v439, %v438
        %v450 = vpack.c.b16 %v441, %v440
        %v451 = vpack.c.b16 %v443, %v442
        %vm452 = vcmask 31744
        %v454 = vsel %vm452, %v444, 0
        %v457 = vsel %vm452, %v445, 0
        %v460 = vsel %vm452, %v446, 0
        %v463 = vsel %vm452, %v447, 0
        %v466 = vsel %vm452, %v448, 0
        %v469 = vsel %vm452, %v449, 0
        %v472 = vsel %vm452, %v450, 0
        %v475 = vsel %vm452, %v451, 0
        %vm477 = vcmask 1041408
        %v479 = vsel %vm477, %v427, 0
        %481 = vmatpush.bf16.msra.mxu0 0
        %482 = vmatpush.bf16.msra.mxu0 0
        %483 = vmatpush.bf16.msra.mxu0 0
        %484 = vmatpush.bf16.msra.mxu0 0
        %485 = vmatpush.bf16.msra.mxu0 0
        %486 = vmatpush.bf16.msra.mxu0 0
        %487 = vmatpush.bf16.msra.mxu0 0
        %488 = vmatpush.bf16.msra.mxu0 %v479
        %489 = vmatmul.bf16.gmra.mxu0 %v454
        %v490 = vpop.f32.mrf.mxu0
        %v491 = vadd.f32 0.0, %v490
        %v492 = vpop.f32.mrf.mxu0
        %v493 = vadd.f32 0.0, %v492
        %494 = vmatmul.bf16.gmra.mxu0 %v457
        %v495 = vpop.f32.mrf.mxu0
        %v496 = vadd.f32 0.0, %v495
        %v497 = vpop.f32.mrf.mxu0
        %v498 = vadd.f32 0.0, %v497
        %499 = vmatmul.bf16.gmra.mxu0 %v460
        %v500 = vpop.f32.mrf.mxu0
        %v501 = vadd.f32 0.0, %v500
        %v502 = vpop.f32.mrf.mxu0
        %v503 = vadd.f32 0.0, %v502
        %504 = vmatmul.bf16.gmra.mxu0 %v463
        %v505 = vpop.f32.mrf.mxu0
        %v506 = vadd.f32 0.0, %v505
        %v507 = vpop.f32.mrf.mxu0
        %v508 = vadd.f32 0.0, %v507
        %509 = vmatmul.bf16.gmra.mxu0 %v466
        %v510 = vpop.f32.mrf.mxu0
        %v511 = vadd.f32 0.0, %v510
        %v512 = vpop.f32.mrf.mxu0
        %v513 = vadd.f32 0.0, %v512
        %514 = vmatmul.bf16.gmra.mxu0 %v469
        %v515 = vpop.f32.mrf.mxu0
        %v516 = vadd.f32 0.0, %v515
        %v517 = vpop.f32.mrf.mxu0
        %v518 = vadd.f32 0.0, %v517
        %519 = vmatmul.bf16.gmra.mxu0 %v472
        %v520 = vpop.f32.mrf.mxu0
        %v521 = vadd.f32 0.0, %v520
        %v522 = vpop.f32.mrf.mxu0
        %v523 = vadd.f32 0.0, %v522
        %524 = vmatmul.bf16.gmra.mxu0 %v475
        %v525 = vpop.f32.mrf.mxu0
        %v526 = vadd.f32 0.0, %v525
        %v527 = vpop.f32.mrf.mxu0
        %v528 = vadd.f32 0.0, %v527
        %529 = vdwg.mxu0
        %v546 = vunpack.c.l.b16 %v206
        %v547 = vunpack.c.l.b16 %v207
        %v548 = vunpack.c.l.b16 %v208
        %v549 = vunpack.c.l.b16 %v209
        %v550 = vunpack.c.l.b16 %v210
        %v551 = vunpack.c.l.b16 %v211
        %v552 = vunpack.c.l.b16 %v212
        %v553 = vunpack.c.l.b16 %v213
        %v554 = vunpack.c.l.b16 %v214
        %v555 = vunpack.c.l.b16 %v215
        %v556 = vunpack.c.l.b16 %v216
        %v557 = vunpack.c.l.b16 %v217
        %v558 = vunpack.c.l.b16 %v218
        %v559 = vunpack.c.l.b16 %v219
        %v560 = vunpack.c.l.b16 %v220
        %v561 = vunpack.c.l.b16 %v221
        %v562 = vpack.c.b16 %v547, %v546
        %v563 = vpack.c.b16 %v549, %v548
        %v564 = vpack.c.b16 %v551, %v550
        %v565 = vpack.c.b16 %v553, %v552
        %v566 = vpack.c.b16 %v555, %v554
        %v567 = vpack.c.b16 %v557, %v556
        %v568 = vpack.c.b16 %v559, %v558
        %v569 = vpack.c.b16 %v561, %v560
        %v571 = vsel %vm452, %v562, 0
        %v574 = vsel %vm452, %v563, 0
        %v577 = vsel %vm452, %v564, 0
        %v580 = vsel %vm452, %v565, 0
        %v583 = vsel %vm452, %v566, 0
        %v586 = vsel %vm452, %v567, 0
        %v589 = vsel %vm452, %v568, 0
        %v592 = vsel %vm452, %v569, 0
        %v595 = vsel %vm477, %v222, 0
        %597 = vmatpush.bf16.msra.mxu0 0
        %598 = vmatpush.bf16.msra.mxu0 0
        %599 = vmatpush.bf16.msra.mxu0 0
        %600 = vmatpush.bf16.msra.mxu0 0
        %601 = vmatpush.bf16.msra.mxu0 0
        %602 = vmatpush.bf16.msra.mxu0 0
        %603 = vmatpush.bf16.msra.mxu0 0
        %604 = vmatpush.bf16.msra.mxu0 %v595
        %605 = vmatmul.bf16.gmra.mxu0 %v571
        %v606 = vpop.f32.mrf.mxu0
        %v607 = vadd.f32 %v491, %v606
        %v608 = vpop.f32.mrf.mxu0
        %v609 = vadd.f32 %v493, %v608
        %610 = vmatmul.bf16.gmra.mxu0 %v574
        %v611 = vpop.f32.mrf.mxu0
        %v612 = vadd.f32 %v496, %v611
        %v613 = vpop.f32.mrf.mxu0
        %v614 = vadd.f32 %v498, %v613
        %615 = vmatmul.bf16.gmra.mxu0 %v577
        %v616 = vpop.f32.mrf.mxu0
        %v617 = vadd.f32 %v501, %v616
        %v618 = vpop.f32.mrf.mxu0
        %v619 = vadd.f32 %v503, %v618
        %620 = vmatmul.bf16.gmra.mxu0 %v580
        %v621 = vpop.f32.mrf.mxu0
        %v622 = vadd.f32 %v506, %v621
        %v623 = vpop.f32.mrf.mxu0
        %v624 = vadd.f32 %v508, %v623
        %625 = vmatmul.bf16.gmra.mxu0 %v583
        %v626 = vpop.f32.mrf.mxu0
        %v627 = vadd.f32 %v511, %v626
        %v628 = vpop.f32.mrf.mxu0
        %v629 = vadd.f32 %v513, %v628
        %630 = vmatmul.bf16.gmra.mxu0 %v586
        %v631 = vpop.f32.mrf.mxu0
        %v632 = vadd.f32 %v516, %v631
        %v633 = vpop.f32.mrf.mxu0
        %v634 = vadd.f32 %v518, %v633
        %635 = vmatmul.bf16.gmra.mxu0 %v589
        %v636 = vpop.f32.mrf.mxu0
        %v637 = vadd.f32 %v521, %v636
        %v638 = vpop.f32.mrf.mxu0
        %v639 = vadd.f32 %v523, %v638
        %640 = vmatmul.bf16.gmra.mxu0 %v592
        %v641 = vpop.f32.mrf.mxu0
        %v642 = vadd.f32 %v526, %v641
        %v643 = vpop.f32.mrf.mxu0
        %v644 = vadd.f32 %v528, %v643
        %645 = vdwg.mxu0
        %v646 = vld [vmem:[%s205] sm:$0xe]
        %v647 = vld [vmem:[%s205 + $0xc] sm:$0xe]
        %v648 = vld [vmem:[%s205 + $0x18] sm:$0xe]
        %v649 = vld [vmem:[%s205 + $0x24] sm:$0xe]
        %v650 = vld [vmem:[%s205 + $0x30] sm:$0xe]
        %v651 = vld [vmem:[%s205 + $0x3c] sm:$0xe]
        %v652 = vld [vmem:[%s205 + $0x48] sm:$0xe]
        %v653 = vld [vmem:[%s205 + $0x54] sm:$0xe]
        %vm670 = vcmask 1042432
        %vm671 = vcmask 1046532
        %vm672 = vmor %vm670, %vm671
        %v673 = vrot.slane %v646, 5
        %v674 = vrot.slane %v673, 4
        %v675 = vrot.slane %v207, 5
        %v676 = vsel %vm672, %v674, %v675
        %v677 = vrot.slane %v675, 4
        %v678 = vrot.slane %v223, 5
        %v679 = vsel %vm672, %v677, %v678
        %v680 = vrot.slane %v647, 5
        %v681 = vrot.slane %v680, 4
        %v682 = vrot.slane %v209, 5
        %v683 = vsel %vm672, %v681, %v682
        %v684 = vrot.slane %v682, 4
        %v685 = vrot.slane %v224, 5
        %v686 = vsel %vm672, %v684, %v685
        %v687 = vrot.slane %v648, 5
        %v688 = vrot.slane %v687, 4
        %v689 = vrot.slane %v211, 5
        %v690 = vsel %vm672, %v688, %v689
        %v691 = vrot.slane %v689, 4
        %v692 = vrot.slane %v225, 5
        %v693 = vsel %vm672, %v691, %v692
        %v694 = vrot.slane %v649, 5
        %v695 = vrot.slane %v694, 4
        %v696 = vrot.slane %v213, 5
        %v697 = vsel %vm672, %v695, %v696
        %v698 = vrot.slane %v696, 4
        %v699 = vrot.slane %v226, 5
        %v700 = vsel %vm672, %v698, %v699
        %v701 = vrot.slane %v650, 5
        %v702 = vrot.slane %v701, 4
        %v703 = vrot.slane %v215, 5
        %v704 = vsel %vm672, %v702, %v703
        %v705 = vrot.slane %v703, 4
        %v706 = vrot.slane %v227, 5
        %v707 = vsel %vm672, %v705, %v706
        %v708 = vrot.slane %v651, 5
        %v709 = vrot.slane %v708, 4
        %v710 = vrot.slane %v217, 5
        %v711 = vsel %vm672, %v709, %v710
        %v712 = vrot.slane %v710, 4
        %v713 = vrot.slane %v228, 5
        %v714 = vsel %vm672, %v712, %v713
        %v715 = vrot.slane %v652, 5
        %v716 = vrot.slane %v715, 4
        %v717 = vrot.slane %v219, 5
        %v718 = vsel %vm672, %v716, %v717
        %v719 = vrot.slane %v717, 4
        %v720 = vrot.slane %v229, 5
        %v721 = vsel %vm672, %v719, %v720
        %v722 = vrot.slane %v653, 5
        %v723 = vrot.slane %v722, 4
        %v724 = vrot.slane %v221, 5
        %v725 = vsel %vm672, %v723, %v724
        %v726 = vrot.slane %v724, 4
        %v727 = vrot.slane %v230, 5
        %v728 = vsel %vm672, %v726, %v727
        %s729 = scalar_lea.vmem %s1, 4
        %v730 = vld [vmem:[%s729] sm:$0x3]
        %v731 = vunpack.c.l.b16 %v676
        %v732 = vunpack.c.l.b16 %v679
        %v733 = vunpack.c.l.b16 %v683
        %v734 = vunpack.c.l.b16 %v686
        %v735 = vunpack.c.l.b16 %v690
        %v736 = vunpack.c.l.b16 %v693
        %v737 = vunpack.c.l.b16 %v697
        %v738 = vunpack.c.l.b16 %v700
        %v739 = vunpack.c.l.b16 %v704
        %v740 = vunpack.c.l.b16 %v707
        %v741 = vunpack.c.l.b16 %v711
        %v742 = vunpack.c.l.b16 %v714
        %v743 = vunpack.c.l.b16 %v718
        %v744 = vunpack.c.l.b16 %v721
        %v745 = vunpack.c.l.b16 %v725
        %v746 = vunpack.c.l.b16 %v728
        %v747 = vpack.c.b16 %v732, %v731
        %v748 = vpack.c.b16 %v734, %v733
        %v749 = vpack.c.b16 %v736, %v735
        %v750 = vpack.c.b16 %v738, %v737
        %v751 = vpack.c.b16 %v740, %v739
        %v752 = vpack.c.b16 %v742, %v741
        %v753 = vpack.c.b16 %v744, %v743
        %v754 = vpack.c.b16 %v746, %v745
        %v756 = vsel %vm452, %v747, 0
        %v759 = vsel %vm452, %v748, 0
        %v762 = vsel %vm452, %v749, 0
        %v765 = vsel %vm452, %v750, 0
        %v768 = vsel %vm452, %v751, 0
        %v771 = vsel %vm452, %v752, 0
        %v774 = vsel %vm452, %v753, 0
        %v777 = vsel %vm452, %v754, 0
        %v780 = vsel %vm477, %v730, 0
        %782 = vmatpush.bf16.msra.mxu0 0
        %783 = vmatpush.bf16.msra.mxu0 0
        %784 = vmatpush.bf16.msra.mxu0 0
        %785 = vmatpush.bf16.msra.mxu0 0
        %786 = vmatpush.bf16.msra.mxu0 0
        %787 = vmatpush.bf16.msra.mxu0 0
        %788 = vmatpush.bf16.msra.mxu0 0
        %789 = vmatpush.bf16.msra.mxu0 %v780
        %790 = vmatmul.bf16.gmra.mxu0 %v756
        %v791 = vpop.f32.mrf.mxu0
        %v792 = vadd.f32 0.0, %v791
        %v793 = vpop.f32.mrf.mxu0
        %v794 = vadd.f32 0.0, %v793
        %795 = vmatmul.bf16.gmra.mxu0 %v759
        %v796 = vpop.f32.mrf.mxu0
        %v797 = vadd.f32 0.0, %v796
        %v798 = vpop.f32.mrf.mxu0
        %v799 = vadd.f32 0.0, %v798
        %800 = vmatmul.bf16.gmra.mxu0 %v762
        %v801 = vpop.f32.mrf.mxu0
        %v802 = vadd.f32 0.0, %v801
        %v803 = vpop.f32.mrf.mxu0
        %v804 = vadd.f32 0.0, %v803
        %805 = vmatmul.bf16.gmra.mxu0 %v765
        %v806 = vpop.f32.mrf.mxu0
        %v807 = vadd.f32 0.0, %v806
        %v808 = vpop.f32.mrf.mxu0
        %v809 = vadd.f32 0.0, %v808
        %810 = vmatmul.bf16.gmra.mxu0 %v768
        %v811 = vpop.f32.mrf.mxu0
        %v812 = vadd.f32 0.0, %v811
        %v813 = vpop.f32.mrf.mxu0
        %v814 = vadd.f32 0.0, %v813
        %815 = vmatmul.bf16.gmra.mxu0 %v771
        %v816 = vpop.f32.mrf.mxu0
        %v817 = vadd.f32 0.0, %v816
        %v818 = vpop.f32.mrf.mxu0
        %v819 = vadd.f32 0.0, %v818
        %820 = vmatmul.bf16.gmra.mxu0 %v774
        %v821 = vpop.f32.mrf.mxu0
        %v822 = vadd.f32 0.0, %v821
        %v823 = vpop.f32.mrf.mxu0
        %v824 = vadd.f32 0.0, %v823
        %825 = vmatmul.bf16.gmra.mxu0 %v777
        %v826 = vpop.f32.mrf.mxu0
        %v827 = vadd.f32 0.0, %v826
        %v828 = vpop.f32.mrf.mxu0
        %v829 = vadd.f32 0.0, %v828
        %830 = vdwg.mxu0
        %v831 = vadd.f32 %v607, %v792
        %v832 = vadd.f32 %v609, %v794
        %v833 = vadd.f32 %v612, %v797
        %v834 = vadd.f32 %v614, %v799
        %v835 = vadd.f32 %v617, %v802
        %v836 = vadd.f32 %v619, %v804
        %v837 = vadd.f32 %v622, %v807
        %v838 = vadd.f32 %v624, %v809
        %v839 = vadd.f32 %v627, %v812
        %v840 = vadd.f32 %v629, %v814
        %v841 = vadd.f32 %v632, %v817
        %v842 = vadd.f32 %v634, %v819
        %v843 = vadd.f32 %v637, %v822
        %v844 = vadd.f32 %v639, %v824
        %v845 = vadd.f32 %v642, %v827
        %v846 = vadd.f32 %v644, %v829
        %s847 = sadd.s32 %s202, 1
        %s848 = smul.u32 %s847, 3
        %s849 = smul.addr %s848, 4
        %s850 = scalar_lea.vmem %s197, %s849
        %v851 = vld [vmem:[%s850] sm:$0xf]
        %v852 = vld [vmem:[%s850 + $0x4] sm:$0xf]
        %v853 = vld [vmem:[%s850 + $0xc] sm:$0xf]
        %v854 = vld [vmem:[%s850 + $0x10] sm:$0xf]
        %v855 = vld [vmem:[%s850 + $0x18] sm:$0xf]
        %v856 = vld [vmem:[%s850 + $0x1c] sm:$0xf]
        %v857 = vld [vmem:[%s850 + $0x24] sm:$0xf]
        %v858 = vld [vmem:[%s850 + $0x28] sm:$0xf]
        %v859 = vld [vmem:[%s850 + $0x30] sm:$0xf]
        %v860 = vld [vmem:[%s850 + $0x34] sm:$0xf]
        %v861 = vld [vmem:[%s850 + $0x3c] sm:$0xf]
        %v862 = vld [vmem:[%s850 + $0x40] sm:$0xf]
        %v863 = vld [vmem:[%s850 + $0x48] sm:$0xf]
        %v864 = vld [vmem:[%s850 + $0x4c] sm:$0xf]
        %v865 = vld [vmem:[%s850 + $0x54] sm:$0xf]
        %v866 = vld [vmem:[%s850 + $0x58] sm:$0xf]
        %s867 = scalar_lea.vmem %s1, 6
        %v868 = vld [vmem:[%s867] sm:$0x3]
        %v885 = vunpack.c.l.b16 %v851
        %v886 = vunpack.c.l.b16 %v852
        %v887 = vunpack.c.l.b16 %v853
        %v888 = vunpack.c.l.b16 %v854
        %v889 = vunpack.c.l.b16 %v855
        %v890 = vunpack.c.l.b16 %v856
        %v891 = vunpack.c.l.b16 %v857
        %v892 = vunpack.c.l.b16 %v858
        %v893 = vunpack.c.l.b16 %v859
        %v894 = vunpack.c.l.b16 %v860
        %v895 = vunpack.c.l.b16 %v861
        %v896 = vunpack.c.l.b16 %v862
        %v897 = vunpack.c.l.b16 %v863
        %v898 = vunpack.c.l.b16 %v864
        %v899 = vunpack.c.l.b16 %v865
        %v900 = vunpack.c.l.b16 %v866
        %v901 = vpack.c.b16 %v886, %v885
        %v902 = vpack.c.b16 %v888, %v887
        %v903 = vpack.c.b16 %v890, %v889
        %v904 = vpack.c.b16 %v892, %v891
        %v905 = vpack.c.b16 %v894, %v893
        %v906 = vpack.c.b16 %v896, %v895
        %v907 = vpack.c.b16 %v898, %v897
        %v908 = vpack.c.b16 %v900, %v899
        %v910 = vsel %vm452, %v901, 0
        %v913 = vsel %vm452, %v902, 0
        %v916 = vsel %vm452, %v903, 0
        %v919 = vsel %vm452, %v904, 0
        %v922 = vsel %vm452, %v905, 0
        %v925 = vsel %vm452, %v906, 0
        %v928 = vsel %vm452, %v907, 0
        %v931 = vsel %vm452, %v908, 0
        %v934 = vsel %vm477, %v868, 0
        %936 = vmatpush.bf16.msra.mxu0 0
        %937 = vmatpush.bf16.msra.mxu0 0
        %938 = vmatpush.bf16.msra.mxu0 0
        %939 = vmatpush.bf16.msra.mxu0 0
        %940 = vmatpush.bf16.msra.mxu0 0
        %941 = vmatpush.bf16.msra.mxu0 0
        %942 = vmatpush.bf16.msra.mxu0 0
        %943 = vmatpush.bf16.msra.mxu0 %v934
        %944 = vmatmul.bf16.gmra.mxu0 %v910
        %v945 = vpop.f32.mrf.mxu0
        %v946 = vadd.f32 0.0, %v945
        %v947 = vpop.f32.mrf.mxu0
        %v948 = vadd.f32 0.0, %v947
        %949 = vmatmul.bf16.gmra.mxu0 %v913
        %v950 = vpop.f32.mrf.mxu0
        %v951 = vadd.f32 0.0, %v950
        %v952 = vpop.f32.mrf.mxu0
        %v953 = vadd.f32 0.0, %v952
        %954 = vmatmul.bf16.gmra.mxu0 %v916
        %v955 = vpop.f32.mrf.mxu0
        %v956 = vadd.f32 0.0, %v955
        %v957 = vpop.f32.mrf.mxu0
        %v958 = vadd.f32 0.0, %v957
        %959 = vmatmul.bf16.gmra.mxu0 %v919
        %v960 = vpop.f32.mrf.mxu0
        %v961 = vadd.f32 0.0, %v960
        %v962 = vpop.f32.mrf.mxu0
        %v963 = vadd.f32 0.0, %v962
        %964 = vmatmul.bf16.gmra.mxu0 %v922
        %v965 = vpop.f32.mrf.mxu0
        %v966 = vadd.f32 0.0, %v965
        %v967 = vpop.f32.mrf.mxu0
        %v968 = vadd.f32 0.0, %v967
        %969 = vmatmul.bf16.gmra.mxu0 %v925
        %v970 = vpop.f32.mrf.mxu0
        %v971 = vadd.f32 0.0, %v970
        %v972 = vpop.f32.mrf.mxu0
        %v973 = vadd.f32 0.0, %v972
        %974 = vmatmul.bf16.gmra.mxu0 %v928
        %v975 = vpop.f32.mrf.mxu0
        %v976 = vadd.f32 0.0, %v975
        %v977 = vpop.f32.mrf.mxu0
        %v978 = vadd.f32 0.0, %v977
        %979 = vmatmul.bf16.gmra.mxu0 %v931
        %v980 = vpop.f32.mrf.mxu0
        %v981 = vadd.f32 0.0, %v980
        %v982 = vpop.f32.mrf.mxu0
        %v983 = vadd.f32 0.0, %v982
        %984 = vdwg.mxu0
        %v985 = vadd.f32 %v831, %v946
        %v986 = vadd.f32 %v832, %v948
        %v987 = vadd.f32 %v833, %v951
        %v988 = vadd.f32 %v834, %v953
        %v989 = vadd.f32 %v835, %v956
        %v990 = vadd.f32 %v836, %v958
        %v991 = vadd.f32 %v837, %v961
        %v992 = vadd.f32 %v838, %v963
        %v993 = vadd.f32 %v839, %v966
        %v994 = vadd.f32 %v840, %v968
        %v995 = vadd.f32 %v841, %v971
        %v996 = vadd.f32 %v842, %v973
        %v997 = vadd.f32 %v843, %v976
        %v998 = vadd.f32 %v844, %v978
        %v999 = vadd.f32 %v845, %v981
        %v1000 = vadd.f32 %v846, %v983
        %v1001 = vld [vmem:[%s850] sm:$0xf]
        %v1002 = vld [vmem:[%s850 + $0x4] sm:$0xf]
        %v1003 = vld [vmem:[%s850 + $0x8] sm:$0x1]
        %v1004 = vld [vmem:[%s850 + $0xc] sm:$0xf]
        %v1005 = vld [vmem:[%s850 + $0x10] sm:$0xf]
        %v1006 = vld [vmem:[%s850 + $0x14] sm:$0x1]
        %v1007 = vld [vmem:[%s850 + $0x18] sm:$0xf]
        %v1008 = vld [vmem:[%s850 + $0x1c] sm:$0xf]
        %v1009 = vld [vmem:[%s850 + $0x20] sm:$0x1]
        %v1010 = vld [vmem:[%s850 + $0x24] sm:$0xf]
        %v1011 = vld [vmem:[%s850 + $0x28] sm:$0xf]
        %v1012 = vld [vmem:[%s850 + $0x2c] sm:$0x1]
        %v1013 = vld [vmem:[%s850 + $0x30] sm:$0xf]
        %v1014 = vld [vmem:[%s850 + $0x34] sm:$0xf]
        %v1015 = vld [vmem:[%s850 + $0x38] sm:$0x1]
        %v1016 = vld [vmem:[%s850 + $0x3c] sm:$0xf]
        %v1017 = vld [vmem:[%s850 + $0x40] sm:$0xf]
        %v1018 = vld [vmem:[%s850 + $0x44] sm:$0x1]
        %v1019 = vld [vmem:[%s850 + $0x48] sm:$0xf]
        %v1020 = vld [vmem:[%s850 + $0x4c] sm:$0xf]
        %v1021 = vld [vmem:[%s850 + $0x50] sm:$0x1]
        %v1022 = vld [vmem:[%s850 + $0x54] sm:$0xf]
        %v1023 = vld [vmem:[%s850 + $0x58] sm:$0xf]
        %v1024 = vld [vmem:[%s850 + $0x5c] sm:$0x1]
        %v1026 = vshrl.u32 %v1001, 16
        %v1028 = vrot.slane %v1026, 4
        %v1029 = vshll.u32 %v1001, 16
        %v1031 = vrot.slane %v1029, 5
        %v1032 = vor.u32 %v1028, %v1031
        %v1033 = vrot.slane %v1032, 4
        %v1035 = vshll.u32 %v1002, 16
        %v1037 = vrot.slane %v1035, 5
        %v1038 = vsel %vm233, %v1033, %v1037
        %v1039 = vshrl.u32 %v1002, 16
        %v1041 = vrot.slane %v1039, 4
        %v1042 = vor.u32 %v1041, %v1037
        %v1043 = vrot.slane %v1042, 4
        %v1045 = vshll.u32 %v1003, 16
        %v1047 = vrot.slane %v1045, 5
        %v1048 = vsel %vm233, %v1043, %v1047
        %v1050 = vshrl.u32 %v1004, 16
        %v1052 = vrot.slane %v1050, 4
        %v1053 = vshll.u32 %v1004, 16
        %v1055 = vrot.slane %v1053, 5
        %v1056 = vor.u32 %v1052, %v1055
        %v1057 = vrot.slane %v1056, 4
        %v1059 = vshll.u32 %v1005, 16
        %v1061 = vrot.slane %v1059, 5
        %v1062 = vsel %vm233, %v1057, %v1061
        %v1063 = vshrl.u32 %v1005, 16
        %v1065 = vrot.slane %v1063, 4
        %v1066 = vor.u32 %v1065, %v1061
        %v1067 = vrot.slane %v1066, 4
        %v1069 = vshll.u32 %v1006, 16
        %v1071 = vrot.slane %v1069, 5
        %v1072 = vsel %vm233, %v1067, %v1071
        %v1074 = vshrl.u32 %v1007, 16
        %v1076 = vrot.slane %v1074, 4
        %v1077 = vshll.u32 %v1007, 16
        %v1079 = vrot.slane %v1077, 5
        %v1080 = vor.u32 %v1076, %v1079
        %v1081 = vrot.slane %v1080, 4
        %v1083 = vshll.u32 %v1008, 16
        %v1085 = vrot.slane %v1083, 5
        %v1086 = vsel %vm233, %v1081, %v1085
        %v1087 = vshrl.u32 %v1008, 16
        %v1089 = vrot.slane %v1087, 4
        %v1090 = vor.u32 %v1089, %v1085
        %v1091 = vrot.slane %v1090, 4
        %v1093 = vshll.u32 %v1009, 16
        %v1095 = vrot.slane %v1093, 5
        %v1096 = vsel %vm233, %v1091, %v1095
        %v1098 = vshrl.u32 %v1010, 16
        %v1100 = vrot.slane %v1098, 4
        %v1101 = vshll.u32 %v1010, 16
        %v1103 = vrot.slane %v1101, 5
        %v1104 = vor.u32 %v1100, %v1103
        %v1105 = vrot.slane %v1104, 4
        %v1107 = vshll.u32 %v1011, 16
        %v1109 = vrot.slane %v1107, 5
        %v1110 = vsel %vm233, %v1105, %v1109
        %v1111 = vshrl.u32 %v1011, 16
        %v1113 = vrot.slane %v1111, 4
        %v1114 = vor.u32 %v1113, %v1109
        %v1115 = vrot.slane %v1114, 4
        %v1117 = vshll.u32 %v1012, 16
        %v1119 = vrot.slane %v1117, 5
        %v1120 = vsel %vm233, %v1115, %v1119
        %v1122 = vshrl.u32 %v1013, 16
        %v1124 = vrot.slane %v1122, 4
        %v1125 = vshll.u32 %v1013, 16
        %v1127 = vrot.slane %v1125, 5
        %v1128 = vor.u32 %v1124, %v1127
        %v1129 = vrot.slane %v1128, 4
        %v1131 = vshll.u32 %v1014, 16
        %v1133 = vrot.slane %v1131, 5
        %v1134 = vsel %vm233, %v1129, %v1133
        %v1135 = vshrl.u32 %v1014, 16
        %v1137 = vrot.slane %v1135, 4
        %v1138 = vor.u32 %v1137, %v1133
        %v1139 = vrot.slane %v1138, 4
        %v1141 = vshll.u32 %v1015, 16
        %v1143 = vrot.slane %v1141, 5
        %v1144 = vsel %vm233, %v1139, %v1143
        %v1146 = vshrl.u32 %v1016, 16
        %v1148 = vrot.slane %v1146, 4
        %v1149 = vshll.u32 %v1016, 16
        %v1151 = vrot.slane %v1149, 5
        %v1152 = vor.u32 %v1148, %v1151
        %v1153 = vrot.slane %v1152, 4
        %v1155 = vshll.u32 %v1017, 16
        %v1157 = vrot.slane %v1155, 5
        %v1158 = vsel %vm233, %v1153, %v1157
        %v1159 = vshrl.u32 %v1017, 16
        %v1161 = vrot.slane %v1159, 4
        %v1162 = vor.u32 %v1161, %v1157
        %v1163 = vrot.slane %v1162, 4
        %v1165 = vshll.u32 %v1018, 16
        %v1167 = vrot.slane %v1165, 5
        %v1168 = vsel %vm233, %v1163, %v1167
        %v1170 = vshrl.u32 %v1019, 16
        %v1172 = vrot.slane %v1170, 4
        %v1173 = vshll.u32 %v1019, 16
        %v1175 = vrot.slane %v1173, 5
        %v1176 = vor.u32 %v1172, %v1175
        %v1177 = vrot.slane %v1176, 4
        %v1179 = vshll.u32 %v1020, 16
        %v1181 = vrot.slane %v1179, 5
        %v1182 = vsel %vm233, %v1177, %v1181
        %v1183 = vshrl.u32 %v1020, 16
        %v1185 = vrot.slane %v1183, 4
        %v1186 = vor.u32 %v1185, %v1181
        %v1187 = vrot.slane %v1186, 4
        %v1189 = vshll.u32 %v1021, 16
        %v1191 = vrot.slane %v1189, 5
        %v1192 = vsel %vm233, %v1187, %v1191
        %v1194 = vshrl.u32 %v1022, 16
        %v1196 = vrot.slane %v1194, 4
        %v1197 = vshll.u32 %v1022, 16
        %v1199 = vrot.slane %v1197, 5
        %v1200 = vor.u32 %v1196, %v1199
        %v1201 = vrot.slane %v1200, 4
        %v1203 = vshll.u32 %v1023, 16
        %v1205 = vrot.slane %v1203, 5
        %v1206 = vsel %vm233, %v1201, %v1205
        %v1207 = vshrl.u32 %v1023, 16
        %v1209 = vrot.slane %v1207, 4
        %v1210 = vor.u32 %v1209, %v1205
        %v1211 = vrot.slane %v1210, 4
        %v1213 = vshll.u32 %v1024, 16
        %v1215 = vrot.slane %v1213, 5
        %v1216 = vsel %vm233, %v1211, %v1215
        %s1217 = scalar_lea.vmem %s1, 8
        %v1218 = vld [vmem:[%s1217] sm:$0x3]
        %v1219 = vunpack.c.l.b16 %v1038
        %v1220 = vunpack.c.l.b16 %v1048
        %v1221 = vunpack.c.l.b16 %v1062
        %v1222 = vunpack.c.l.b16 %v1072
        %v1223 = vunpack.c.l.b16 %v1086
        %v1224 = vunpack.c.l.b16 %v1096
        %v1225 = vunpack.c.l.b16 %v1110
        %v1226 = vunpack.c.l.b16 %v1120
        %v1227 = vunpack.c.l.b16 %v1134
        %v1228 = vunpack.c.l.b16 %v1144
        %v1229 = vunpack.c.l.b16 %v1158
        %v1230 = vunpack.c.l.b16 %v1168
        %v1231 = vunpack.c.l.b16 %v1182
        %v1232 = vunpack.c.l.b16 %v1192
        %v1233 = vunpack.c.l.b16 %v1206
        %v1234 = vunpack.c.l.b16 %v1216
        %v1235 = vpack.c.b16 %v1220, %v1219
        %v1236 = vpack.c.b16 %v1222, %v1221
        %v1237 = vpack.c.b16 %v1224, %v1223
        %v1238 = vpack.c.b16 %v1226, %v1225
        %v1239 = vpack.c.b16 %v1228, %v1227
        %v1240 = vpack.c.b16 %v1230, %v1229
        %v1241 = vpack.c.b16 %v1232, %v1231
        %v1242 = vpack.c.b16 %v1234, %v1233
        %v1244 = vsel %vm452, %v1235, 0
        %v1247 = vsel %vm452, %v1236, 0
        %v1250 = vsel %vm452, %v1237, 0
        %v1253 = vsel %vm452, %v1238, 0
        %v1256 = vsel %vm452, %v1239, 0
        %v1259 = vsel %vm452, %v1240, 0
        %v1262 = vsel %vm452, %v1241, 0
        %v1265 = vsel %vm452, %v1242, 0
        %v1268 = vsel %vm477, %v1218, 0
        %1270 = vmatpush.bf16.msra.mxu0 0
        %1271 = vmatpush.bf16.msra.mxu0 0
        %1272 = vmatpush.bf16.msra.mxu0 0
        %1273 = vmatpush.bf16.msra.mxu0 0
        %1274 = vmatpush.bf16.msra.mxu0 0
        %1275 = vmatpush.bf16.msra.mxu0 0
        %1276 = vmatpush.bf16.msra.mxu0 0
        %1277 = vmatpush.bf16.msra.mxu0 %v1268
        %1278 = vmatmul.bf16.gmra.mxu0 %v1244
        %v1279 = vpop.f32.mrf.mxu0
        %v1280 = vadd.f32 0.0, %v1279
        %v1281 = vpop.f32.mrf.mxu0
        %v1282 = vadd.f32 0.0, %v1281
        %1283 = vmatmul.bf16.gmra.mxu0 %v1247
        %v1284 = vpop.f32.mrf.mxu0
        %v1285 = vadd.f32 0.0, %v1284
        %v1286 = vpop.f32.mrf.mxu0
        %v1287 = vadd.f32 0.0, %v1286
        %1288 = vmatmul.bf16.gmra.mxu0 %v1250
        %v1289 = vpop.f32.mrf.mxu0
        %v1290 = vadd.f32 0.0, %v1289
        %v1291 = vpop.f32.mrf.mxu0
        %v1292 = vadd.f32 0.0, %v1291
        %1293 = vmatmul.bf16.gmra.mxu0 %v1253
        %v1294 = vpop.f32.mrf.mxu0
        %v1295 = vadd.f32 0.0, %v1294
        %v1296 = vpop.f32.mrf.mxu0
        %v1297 = vadd.f32 0.0, %v1296
        %1298 = vmatmul.bf16.gmra.mxu0 %v1256
        %v1299 = vpop.f32.mrf.mxu0
        %v1300 = vadd.f32 0.0, %v1299
        %v1301 = vpop.f32.mrf.mxu0
        %v1302 = vadd.f32 0.0, %v1301
        %1303 = vmatmul.bf16.gmra.mxu0 %v1259
        %v1304 = vpop.f32.mrf.mxu0
        %v1305 = vadd.f32 0.0, %v1304
        %v1306 = vpop.f32.mrf.mxu0
        %v1307 = vadd.f32 0.0, %v1306
        %1308 = vmatmul.bf16.gmra.mxu0 %v1262
        %v1309 = vpop.f32.mrf.mxu0
        %v1310 = vadd.f32 0.0, %v1309
        %v1311 = vpop.f32.mrf.mxu0
        %v1312 = vadd.f32 0.0, %v1311
        %1313 = vmatmul.bf16.gmra.mxu0 %v1265
        %v1314 = vpop.f32.mrf.mxu0
        %v1315 = vadd.f32 0.0, %v1314
        %v1316 = vpop.f32.mrf.mxu0
        %v1317 = vadd.f32 0.0, %v1316
        %1318 = vdwg.mxu0
        %v1319 = vadd.f32 %v985, %v1280
        %v1320 = vadd.f32 %v986, %v1282
        %v1321 = vadd.f32 %v987, %v1285
        %v1322 = vadd.f32 %v988, %v1287
        %v1323 = vadd.f32 %v989, %v1290
        %v1324 = vadd.f32 %v990, %v1292
        %v1325 = vadd.f32 %v991, %v1295
        %v1326 = vadd.f32 %v992, %v1297
        %v1327 = vadd.f32 %v993, %v1300
        %v1328 = vadd.f32 %v994, %v1302
        %v1329 = vadd.f32 %v995, %v1305
        %v1330 = vadd.f32 %v996, %v1307
        %v1331 = vadd.f32 %v997, %v1310
        %v1332 = vadd.f32 %v998, %v1312
        %v1333 = vadd.f32 %v999, %v1315
        %v1334 = vadd.f32 %v1000, %v1317
        %v1335 = vld [vmem:[%s850] sm:$0xe]
        %v1336 = vld [vmem:[%s850 + $0xc] sm:$0xe]
        %v1337 = vld [vmem:[%s850 + $0x18] sm:$0xe]
        %v1338 = vld [vmem:[%s850 + $0x24] sm:$0xe]
        %v1339 = vld [vmem:[%s850 + $0x30] sm:$0xe]
        %v1340 = vld [vmem:[%s850 + $0x3c] sm:$0xe]
        %v1341 = vld [vmem:[%s850 + $0x48] sm:$0xe]
        %v1342 = vld [vmem:[%s850 + $0x54] sm:$0xe]
        %v1367 = vrot.slane %v1335, 5
        %v1368 = vrot.slane %v1367, 4
        %v1369 = vrot.slane %v1002, 5
        %v1370 = vsel %vm672, %v1368, %v1369
        %v1371 = vrot.slane %v1369, 4
        %v1372 = vrot.slane %v1003, 5
        %v1373 = vsel %vm672, %v1371, %v1372
        %v1374 = vrot.slane %v1336, 5
        %v1375 = vrot.slane %v1374, 4
        %v1376 = vrot.slane %v1005, 5
        %v1377 = vsel %vm672, %v1375, %v1376
        %v1378 = vrot.slane %v1376, 4
        %v1379 = vrot.slane %v1006, 5
        %v1380 = vsel %vm672, %v1378, %v1379
        %v1381 = vrot.slane %v1337, 5
        %v1382 = vrot.slane %v1381, 4
        %v1383 = vrot.slane %v1008, 5
        %v1384 = vsel %vm672, %v1382, %v1383
        %v1385 = vrot.slane %v1383, 4
        %v1386 = vrot.slane %v1009, 5
        %v1387 = vsel %vm672, %v1385, %v1386
        %v1388 = vrot.slane %v1338, 5
        %v1389 = vrot.slane %v1388, 4
        %v1390 = vrot.slane %v1011, 5
        %v1391 = vsel %vm672, %v1389, %v1390
        %v1392 = vrot.slane %v1390, 4
        %v1393 = vrot.slane %v1012, 5
        %v1394 = vsel %vm672, %v1392, %v1393
        %v1395 = vrot.slane %v1339, 5
        %v1396 = vrot.slane %v1395, 4
        %v1397 = vrot.slane %v1014, 5
        %v1398 = vsel %vm672, %v1396, %v1397
        %v1399 = vrot.slane %v1397, 4
        %v1400 = vrot.slane %v1015, 5
        %v1401 = vsel %vm672, %v1399, %v1400
        %v1402 = vrot.slane %v1340, 5
        %v1403 = vrot.slane %v1402, 4
        %v1404 = vrot.slane %v1017, 5
        %v1405 = vsel %vm672, %v1403, %v1404
        %v1406 = vrot.slane %v1404, 4
        %v1407 = vrot.slane %v1018, 5
        %v1408 = vsel %vm672, %v1406, %v1407
        %v1409 = vrot.slane %v1341, 5
        %v1410 = vrot.slane %v1409, 4
        %v1411 = vrot.slane %v1020, 5
        %v1412 = vsel %vm672, %v1410, %v1411
        %v1413 = vrot.slane %v1411, 4
        %v1414 = vrot.slane %v1021, 5
        %v1415 = vsel %vm672, %v1413, %v1414
        %v1416 = vrot.slane %v1342, 5
        %v1417 = vrot.slane %v1416, 4
        %v1418 = vrot.slane %v1023, 5
        %v1419 = vsel %vm672, %v1417, %v1418
        %v1420 = vrot.slane %v1418, 4
        %v1421 = vrot.slane %v1024, 5
        %v1422 = vsel %vm672, %v1420, %v1421
        %s1423 = scalar_lea.vmem %s1, 10
        %v1424 = vld [vmem:[%s1423] sm:$0x3]
        %v1425 = vunpack.c.l.b16 %v1370
        %v1426 = vunpack.c.l.b16 %v1373
        %v1427 = vunpack.c.l.b16 %v1377
        %v1428 = vunpack.c.l.b16 %v1380
        %v1429 = vunpack.c.l.b16 %v1384
        %v1430 = vunpack.c.l.b16 %v1387
        %v1431 = vunpack.c.l.b16 %v1391
        %v1432 = vunpack.c.l.b16 %v1394
        %v1433 = vunpack.c.l.b16 %v1398
        %v1434 = vunpack.c.l.b16 %v1401
        %v1435 = vunpack.c.l.b16 %v1405
        %v1436 = vunpack.c.l.b16 %v1408
        %v1437 = vunpack.c.l.b16 %v1412
        %v1438 = vunpack.c.l.b16 %v1415
        %v1439 = vunpack.c.l.b16 %v1419
        %v1440 = vunpack.c.l.b16 %v1422
        %v1441 = vpack.c.b16 %v1426, %v1425
        %v1442 = vpack.c.b16 %v1428, %v1427
        %v1443 = vpack.c.b16 %v1430, %v1429
        %v1444 = vpack.c.b16 %v1432, %v1431
        %v1445 = vpack.c.b16 %v1434, %v1433
        %v1446 = vpack.c.b16 %v1436, %v1435
        %v1447 = vpack.c.b16 %v1438, %v1437
        %v1448 = vpack.c.b16 %v1440, %v1439
        %v1450 = vsel %vm452, %v1441, 0
        %v1453 = vsel %vm452, %v1442, 0
        %v1456 = vsel %vm452, %v1443, 0
        %v1459 = vsel %vm452, %v1444, 0
        %v1462 = vsel %vm452, %v1445, 0
        %v1465 = vsel %vm452, %v1446, 0
        %v1468 = vsel %vm452, %v1447, 0
        %v1471 = vsel %vm452, %v1448, 0
        %v1474 = vsel %vm477, %v1424, 0
        %1476 = vmatpush.bf16.msra.mxu0 0
        %1477 = vmatpush.bf16.msra.mxu0 0
        %1478 = vmatpush.bf16.msra.mxu0 0
        %1479 = vmatpush.bf16.msra.mxu0 0
        %1480 = vmatpush.bf16.msra.mxu0 0
        %1481 = vmatpush.bf16.msra.mxu0 0
        %1482 = vmatpush.bf16.msra.mxu0 0
        %1483 = vmatpush.bf16.msra.mxu0 %v1474
        %1484 = vmatmul.bf16.gmra.mxu0 %v1450
        %v1485 = vpop.f32.mrf.mxu0
        %v1486 = vadd.f32 0.0, %v1485
        %v1487 = vpop.f32.mrf.mxu0
        %v1488 = vadd.f32 0.0, %v1487
        %1489 = vmatmul.bf16.gmra.mxu0 %v1453
        %v1490 = vpop.f32.mrf.mxu0
        %v1491 = vadd.f32 0.0, %v1490
        %v1492 = vpop.f32.mrf.mxu0
        %v1493 = vadd.f32 0.0, %v1492
        %1494 = vmatmul.bf16.gmra.mxu0 %v1456
        %v1495 = vpop.f32.mrf.mxu0
        %v1496 = vadd.f32 0.0, %v1495
        %v1497 = vpop.f32.mrf.mxu0
        %v1498 = vadd.f32 0.0, %v1497
        %1499 = vmatmul.bf16.gmra.mxu0 %v1459
        %v1500 = vpop.f32.mrf.mxu0
        %v1501 = vadd.f32 0.0, %v1500
        %v1502 = vpop.f32.mrf.mxu0
        %v1503 = vadd.f32 0.0, %v1502
        %1504 = vmatmul.bf16.gmra.mxu0 %v1462
        %v1505 = vpop.f32.mrf.mxu0
        %v1506 = vadd.f32 0.0, %v1505
        %v1507 = vpop.f32.mrf.mxu0
        %v1508 = vadd.f32 0.0, %v1507
        %1509 = vmatmul.bf16.gmra.mxu0 %v1465
        %v1510 = vpop.f32.mrf.mxu0
        %v1511 = vadd.f32 0.0, %v1510
        %v1512 = vpop.f32.mrf.mxu0
        %v1513 = vadd.f32 0.0, %v1512
        %1514 = vmatmul.bf16.gmra.mxu0 %v1468
        %v1515 = vpop.f32.mrf.mxu0
        %v1516 = vadd.f32 0.0, %v1515
        %v1517 = vpop.f32.mrf.mxu0
        %v1518 = vadd.f32 0.0, %v1517
        %1519 = vmatmul.bf16.gmra.mxu0 %v1471
        %v1520 = vpop.f32.mrf.mxu0
        %v1521 = vadd.f32 0.0, %v1520
        %v1522 = vpop.f32.mrf.mxu0
        %v1523 = vadd.f32 0.0, %v1522
        %1524 = vdwg.mxu0
        %v1525 = vadd.f32 %v1319, %v1486
        %v1526 = vadd.f32 %v1320, %v1488
        %v1527 = vadd.f32 %v1321, %v1491
        %v1528 = vadd.f32 %v1322, %v1493
        %v1529 = vadd.f32 %v1323, %v1496
        %v1530 = vadd.f32 %v1324, %v1498
        %v1531 = vadd.f32 %v1325, %v1501
        %v1532 = vadd.f32 %v1326, %v1503
        %v1533 = vadd.f32 %v1327, %v1506
        %v1534 = vadd.f32 %v1328, %v1508
        %v1535 = vadd.f32 %v1329, %v1511
        %v1536 = vadd.f32 %v1330, %v1513
        %v1537 = vadd.f32 %v1331, %v1516
        %v1538 = vadd.f32 %v1332, %v1518
        %v1539 = vadd.f32 %v1333, %v1521
        %v1540 = vadd.f32 %v1334, %v1523
        %s1541 = sadd.s32 %s202, 2
        %s1542 = smul.u32 %s1541, 3
        %s1543 = smul.addr %s1542, 4
        %s1544 = scalar_lea.vmem %s197, %s1543
        %v1545 = vld [vmem:[%s1544] sm:$0xf]
        %v1546 = vld [vmem:[%s1544 + $0x4] sm:$0xf]
        %v1547 = vld [vmem:[%s1544 + $0xc] sm:$0xf]
        %v1548 = vld [vmem:[%s1544 + $0x10] sm:$0xf]
        %v1549 = vld [vmem:[%s1544 + $0x18] sm:$0xf]
        %v1550 = vld [vmem:[%s1544 + $0x1c] sm:$0xf]
        %v1551 = vld [vmem:[%s1544 + $0x24] sm:$0xf]
        %v1552 = vld [vmem:[%s1544 + $0x28] sm:$0xf]
        %v1553 = vld [vmem:[%s1544 + $0x30] sm:$0xf]
        %v1554 = vld [vmem:[%s1544 + $0x34] sm:$0xf]
        %v1555 = vld [vmem:[%s1544 + $0x3c] sm:$0xf]
        %v1556 = vld [vmem:[%s1544 + $0x40] sm:$0xf]
        %v1557 = vld [vmem:[%s1544 + $0x48] sm:$0xf]
        %v1558 = vld [vmem:[%s1544 + $0x4c] sm:$0xf]
        %v1559 = vld [vmem:[%s1544 + $0x54] sm:$0xf]
        %v1560 = vld [vmem:[%s1544 + $0x58] sm:$0xf]
        %s1561 = scalar_lea.vmem %s1, 12
        %v1562 = vld [vmem:[%s1561] sm:$0x3]
        %v1579 = vunpack.c.l.b16 %v1545
        %v1580 = vunpack.c.l.b16 %v1546
        %v1581 = vunpack.c.l.b16 %v1547
        %v1582 = vunpack.c.l.b16 %v1548
        %v1583 = vunpack.c.l.b16 %v1549
        %v1584 = vunpack.c.l.b16 %v1550
        %v1585 = vunpack.c.l.b16 %v1551
        %v1586 = vunpack.c.l.b16 %v1552
        %v1587 = vunpack.c.l.b16 %v1553
        %v1588 = vunpack.c.l.b16 %v1554
        %v1589 = vunpack.c.l.b16 %v1555
        %v1590 = vunpack.c.l.b16 %v1556
        %v1591 = vunpack.c.l.b16 %v1557
        %v1592 = vunpack.c.l.b16 %v1558
        %v1593 = vunpack.c.l.b16 %v1559
        %v1594 = vunpack.c.l.b16 %v1560
        %v1595 = vpack.c.b16 %v1580, %v1579
        %v1596 = vpack.c.b16 %v1582, %v1581
        %v1597 = vpack.c.b16 %v1584, %v1583
        %v1598 = vpack.c.b16 %v1586, %v1585
        %v1599 = vpack.c.b16 %v1588, %v1587
        %v1600 = vpack.c.b16 %v1590, %v1589
        %v1601 = vpack.c.b16 %v1592, %v1591
        %v1602 = vpack.c.b16 %v1594, %v1593
        %v1604 = vsel %vm452, %v1595, 0
        %v1607 = vsel %vm452, %v1596, 0
        %v1610 = vsel %vm452, %v1597, 0
        %v1613 = vsel %vm452, %v1598, 0
        %v1616 = vsel %vm452, %v1599, 0
        %v1619 = vsel %vm452, %v1600, 0
        %v1622 = vsel %vm452, %v1601, 0
        %v1625 = vsel %vm452, %v1602, 0
        %v1628 = vsel %vm477, %v1562, 0
        %1630 = vmatpush.bf16.msra.mxu0 0
        %1631 = vmatpush.bf16.msra.mxu0 0
        %1632 = vmatpush.bf16.msra.mxu0 0
        %1633 = vmatpush.bf16.msra.mxu0 0
        %1634 = vmatpush.bf16.msra.mxu0 0
        %1635 = vmatpush.bf16.msra.mxu0 0
        %1636 = vmatpush.bf16.msra.mxu0 0
        %1637 = vmatpush.bf16.msra.mxu0 %v1628
        %1638 = vmatmul.bf16.gmra.mxu0 %v1604
        %v1639 = vpop.f32.mrf.mxu0
        %v1640 = vadd.f32 0.0, %v1639
        %v1641 = vpop.f32.mrf.mxu0
        %v1642 = vadd.f32 0.0, %v1641
        %1643 = vmatmul.bf16.gmra.mxu0 %v1607
        %v1644 = vpop.f32.mrf.mxu0
        %v1645 = vadd.f32 0.0, %v1644
        %v1646 = vpop.f32.mrf.mxu0
        %v1647 = vadd.f32 0.0, %v1646
        %1648 = vmatmul.bf16.gmra.mxu0 %v1610
        %v1649 = vpop.f32.mrf.mxu0
        %v1650 = vadd.f32 0.0, %v1649
        %v1651 = vpop.f32.mrf.mxu0
        %v1652 = vadd.f32 0.0, %v1651
        %1653 = vmatmul.bf16.gmra.mxu0 %v1613
        %v1654 = vpop.f32.mrf.mxu0
        %v1655 = vadd.f32 0.0, %v1654
        %v1656 = vpop.f32.mrf.mxu0
        %v1657 = vadd.f32 0.0, %v1656
        %1658 = vmatmul.bf16.gmra.mxu0 %v1616
        %v1659 = vpop.f32.mrf.mxu0
        %v1660 = vadd.f32 0.0, %v1659
        %v1661 = vpop.f32.mrf.mxu0
        %v1662 = vadd.f32 0.0, %v1661
        %1663 = vmatmul.bf16.gmra.mxu0 %v1619
        %v1664 = vpop.f32.mrf.mxu0
        %v1665 = vadd.f32 0.0, %v1664
        %v1666 = vpop.f32.mrf.mxu0
        %v1667 = vadd.f32 0.0, %v1666
        %1668 = vmatmul.bf16.gmra.mxu0 %v1622
        %v1669 = vpop.f32.mrf.mxu0
        %v1670 = vadd.f32 0.0, %v1669
        %v1671 = vpop.f32.mrf.mxu0
        %v1672 = vadd.f32 0.0, %v1671
        %1673 = vmatmul.bf16.gmra.mxu0 %v1625
        %v1674 = vpop.f32.mrf.mxu0
        %v1675 = vadd.f32 0.0, %v1674
        %v1676 = vpop.f32.mrf.mxu0
        %v1677 = vadd.f32 0.0, %v1676
        %1678 = vdwg.mxu0
        %v1679 = vadd.f32 %v1525, %v1640
        %v1680 = vadd.f32 %v1526, %v1642
        %v1681 = vadd.f32 %v1527, %v1645
        %v1682 = vadd.f32 %v1528, %v1647
        %v1683 = vadd.f32 %v1529, %v1650
        %v1684 = vadd.f32 %v1530, %v1652
        %v1685 = vadd.f32 %v1531, %v1655
        %v1686 = vadd.f32 %v1532, %v1657
        %v1687 = vadd.f32 %v1533, %v1660
        %v1688 = vadd.f32 %v1534, %v1662
        %v1689 = vadd.f32 %v1535, %v1665
        %v1690 = vadd.f32 %v1536, %v1667
        %v1691 = vadd.f32 %v1537, %v1670
        %v1692 = vadd.f32 %v1538, %v1672
        %v1693 = vadd.f32 %v1539, %v1675
        %v1694 = vadd.f32 %v1540, %v1677
        %v1695 = vld [vmem:[%s1544] sm:$0xf]
        %v1696 = vld [vmem:[%s1544 + $0x4] sm:$0xf]
        %v1697 = vld [vmem:[%s1544 + $0x8] sm:$0x1]
        %v1698 = vld [vmem:[%s1544 + $0xc] sm:$0xf]
        %v1699 = vld [vmem:[%s1544 + $0x10] sm:$0xf]
        %v1700 = vld [vmem:[%s1544 + $0x14] sm:$0x1]
        %v1701 = vld [vmem:[%s1544 + $0x18] sm:$0xf]
        %v1702 = vld [vmem:[%s1544 + $0x1c] sm:$0xf]
        %v1703 = vld [vmem:[%s1544 + $0x20] sm:$0x1]
        %v1704 = vld [vmem:[%s1544 + $0x24] sm:$0xf]
        %v1705 = vld [vmem:[%s1544 + $0x28] sm:$0xf]
        %v1706 = vld [vmem:[%s1544 + $0x2c] sm:$0x1]
        %v1707 = vld [vmem:[%s1544 + $0x30] sm:$0xf]
        %v1708 = vld [vmem:[%s1544 + $0x34] sm:$0xf]
        %v1709 = vld [vmem:[%s1544 + $0x38] sm:$0x1]
        %v1710 = vld [vmem:[%s1544 + $0x3c] sm:$0xf]
        %v1711 = vld [vmem:[%s1544 + $0x40] sm:$0xf]
        %v1712 = vld [vmem:[%s1544 + $0x44] sm:$0x1]
        %v1713 = vld [vmem:[%s1544 + $0x48] sm:$0xf]
        %v1714 = vld [vmem:[%s1544 + $0x4c] sm:$0xf]
        %v1715 = vld [vmem:[%s1544 + $0x50] sm:$0x1]
        %v1716 = vld [vmem:[%s1544 + $0x54] sm:$0xf]
        %v1717 = vld [vmem:[%s1544 + $0x58] sm:$0xf]
        %v1718 = vld [vmem:[%s1544 + $0x5c] sm:$0x1]
        %v1720 = vshrl.u32 %v1695, 16
        %v1722 = vrot.slane %v1720, 4
        %v1723 = vshll.u32 %v1695, 16
        %v1725 = vrot.slane %v1723, 5
        %v1726 = vor.u32 %v1722, %v1725
        %v1727 = vrot.slane %v1726, 4
        %v1729 = vshll.u32 %v1696, 16
        %v1731 = vrot.slane %v1729, 5
        %v1732 = vsel %vm233, %v1727, %v1731
        %v1733 = vshrl.u32 %v1696, 16
        %v1735 = vrot.slane %v1733, 4
        %v1736 = vor.u32 %v1735, %v1731
        %v1737 = vrot.slane %v1736, 4
        %v1739 = vshll.u32 %v1697, 16
        %v1741 = vrot.slane %v1739, 5
        %v1742 = vsel %vm233, %v1737, %v1741
        %v1744 = vshrl.u32 %v1698, 16
        %v1746 = vrot.slane %v1744, 4
        %v1747 = vshll.u32 %v1698, 16
        %v1749 = vrot.slane %v1747, 5
        %v1750 = vor.u32 %v1746, %v1749
        %v1751 = vrot.slane %v1750, 4
        %v1753 = vshll.u32 %v1699, 16
        %v1755 = vrot.slane %v1753, 5
        %v1756 = vsel %vm233, %v1751, %v1755
        %v1757 = vshrl.u32 %v1699, 16
        %v1759 = vrot.slane %v1757, 4
        %v1760 = vor.u32 %v1759, %v1755
        %v1761 = vrot.slane %v1760, 4
        %v1763 = vshll.u32 %v1700, 16
        %v1765 = vrot.slane %v1763, 5
        %v1766 = vsel %vm233, %v1761, %v1765
        %v1768 = vshrl.u32 %v1701, 16
        %v1770 = vrot.slane %v1768, 4
        %v1771 = vshll.u32 %v1701, 16
        %v1773 = vrot.slane %v1771, 5
        %v1774 = vor.u32 %v1770, %v1773
        %v1775 = vrot.slane %v1774, 4
        %v1777 = vshll.u32 %v1702, 16
        %v1779 = vrot.slane %v1777, 5
        %v1780 = vsel %vm233, %v1775, %v1779
        %v1781 = vshrl.u32 %v1702, 16
        %v1783 = vrot.slane %v1781, 4
        %v1784 = vor.u32 %v1783, %v1779
        %v1785 = vrot.slane %v1784, 4
        %v1787 = vshll.u32 %v1703, 16
        %v1789 = vrot.slane %v1787, 5
        %v1790 = vsel %vm233, %v1785, %v1789
        %v1792 = vshrl.u32 %v1704, 16
        %v1794 = vrot.slane %v1792, 4
        %v1795 = vshll.u32 %v1704, 16
        %v1797 = vrot.slane %v1795, 5
        %v1798 = vor.u32 %v1794, %v1797
        %v1799 = vrot.slane %v1798, 4
        %v1801 = vshll.u32 %v1705, 16
        %v1803 = vrot.slane %v1801, 5
        %v1804 = vsel %vm233, %v1799, %v1803
        %v1805 = vshrl.u32 %v1705, 16
        %v1807 = vrot.slane %v1805, 4
        %v1808 = vor.u32 %v1807, %v1803
        %v1809 = vrot.slane %v1808, 4
        %v1811 = vshll.u32 %v1706, 16
        %v1813 = vrot.slane %v1811, 5
        %v1814 = vsel %vm233, %v1809, %v1813
        %v1816 = vshrl.u32 %v1707, 16
        %v1818 = vrot.slane %v1816, 4
        %v1819 = vshll.u32 %v1707, 16
        %v1821 = vrot.slane %v1819, 5
        %v1822 = vor.u32 %v1818, %v1821
        %v1823 = vrot.slane %v1822, 4
        %v1825 = vshll.u32 %v1708, 16
        %v1827 = vrot.slane %v1825, 5
        %v1828 = vsel %vm233, %v1823, %v1827
        %v1829 = vshrl.u32 %v1708, 16
        %v1831 = vrot.slane %v1829, 4
        %v1832 = vor.u32 %v1831, %v1827
        %v1833 = vrot.slane %v1832, 4
        %v1835 = vshll.u32 %v1709, 16
        %v1837 = vrot.slane %v1835, 5
        %v1838 = vsel %vm233, %v1833, %v1837
        %v1840 = vshrl.u32 %v1710, 16
        %v1842 = vrot.slane %v1840, 4
        %v1843 = vshll.u32 %v1710, 16
        %v1845 = vrot.slane %v1843, 5
        %v1846 = vor.u32 %v1842, %v1845
        %v1847 = vrot.slane %v1846, 4
        %v1849 = vshll.u32 %v1711, 16
        %v1851 = vrot.slane %v1849, 5
        %v1852 = vsel %vm233, %v1847, %v1851
        %v1853 = vshrl.u32 %v1711, 16
        %v1855 = vrot.slane %v1853, 4
        %v1856 = vor.u32 %v1855, %v1851
        %v1857 = vrot.slane %v1856, 4
        %v1859 = vshll.u32 %v1712, 16
        %v1861 = vrot.slane %v1859, 5
        %v1862 = vsel %vm233, %v1857, %v1861
        %v1864 = vshrl.u32 %v1713, 16
        %v1866 = vrot.slane %v1864, 4
        %v1867 = vshll.u32 %v1713, 16
        %v1869 = vrot.slane %v1867, 5
        %v1870 = vor.u32 %v1866, %v1869
        %v1871 = vrot.slane %v1870, 4
        %v1873 = vshll.u32 %v1714, 16
        %v1875 = vrot.slane %v1873, 5
        %v1876 = vsel %vm233, %v1871, %v1875
        %v1877 = vshrl.u32 %v1714, 16
        %v1879 = vrot.slane %v1877, 4
        %v1880 = vor.u32 %v1879, %v1875
        %v1881 = vrot.slane %v1880, 4
        %v1883 = vshll.u32 %v1715, 16
        %v1885 = vrot.slane %v1883, 5
        %v1886 = vsel %vm233, %v1881, %v1885
        %v1888 = vshrl.u32 %v1716, 16
        %v1890 = vrot.slane %v1888, 4
        %v1891 = vshll.u32 %v1716, 16
        %v1893 = vrot.slane %v1891, 5
        %v1894 = vor.u32 %v1890, %v1893
        %v1895 = vrot.slane %v1894, 4
        %v1897 = vshll.u32 %v1717, 16
        %v1899 = vrot.slane %v1897, 5
        %v1900 = vsel %vm233, %v1895, %v1899
        %v1901 = vshrl.u32 %v1717, 16
        %v1903 = vrot.slane %v1901, 4
        %v1904 = vor.u32 %v1903, %v1899
        %v1905 = vrot.slane %v1904, 4
        %v1907 = vshll.u32 %v1718, 16
        %v1909 = vrot.slane %v1907, 5
        %v1910 = vsel %vm233, %v1905, %v1909
        %s1911 = scalar_lea.vmem %s1, 14
        %v1912 = vld [vmem:[%s1911] sm:$0x3]
        %v1913 = vunpack.c.l.b16 %v1732
        %v1914 = vunpack.c.l.b16 %v1742
        %v1915 = vunpack.c.l.b16 %v1756
        %v1916 = vunpack.c.l.b16 %v1766
        %v1917 = vunpack.c.l.b16 %v1780
        %v1918 = vunpack.c.l.b16 %v1790
        %v1919 = vunpack.c.l.b16 %v1804
        %v1920 = vunpack.c.l.b16 %v1814
        %v1921 = vunpack.c.l.b16 %v1828
        %v1922 = vunpack.c.l.b16 %v1838
        %v1923 = vunpack.c.l.b16 %v1852
        %v1924 = vunpack.c.l.b16 %v1862
        %v1925 = vunpack.c.l.b16 %v1876
        %v1926 = vunpack.c.l.b16 %v1886
        %v1927 = vunpack.c.l.b16 %v1900
        %v1928 = vunpack.c.l.b16 %v1910
        %v1929 = vpack.c.b16 %v1914, %v1913
        %v1930 = vpack.c.b16 %v1916, %v1915
        %v1931 = vpack.c.b16 %v1918, %v1917
        %v1932 = vpack.c.b16 %v1920, %v1919
        %v1933 = vpack.c.b16 %v1922, %v1921
        %v1934 = vpack.c.b16 %v1924, %v1923
        %v1935 = vpack.c.b16 %v1926, %v1925
        %v1936 = vpack.c.b16 %v1928, %v1927
        %v1938 = vsel %vm452, %v1929, 0
        %v1941 = vsel %vm452, %v1930, 0
        %v1944 = vsel %vm452, %v1931, 0
        %v1947 = vsel %vm452, %v1932, 0
        %v1950 = vsel %vm452, %v1933, 0
        %v1953 = vsel %vm452, %v1934, 0
        %v1956 = vsel %vm452, %v1935, 0
        %v1959 = vsel %vm452, %v1936, 0
        %v1962 = vsel %vm477, %v1912, 0
        %1964 = vmatpush.bf16.msra.mxu0 0
        %1965 = vmatpush.bf16.msra.mxu0 0
        %1966 = vmatpush.bf16.msra.mxu0 0
        %1967 = vmatpush.bf16.msra.mxu0 0
        %1968 = vmatpush.bf16.msra.mxu0 0
        %1969 = vmatpush.bf16.msra.mxu0 0
        %1970 = vmatpush.bf16.msra.mxu0 0
        %1971 = vmatpush.bf16.msra.mxu0 %v1962
        %1972 = vmatmul.bf16.gmra.mxu0 %v1938
        %v1973 = vpop.f32.mrf.mxu0
        %v1974 = vadd.f32 0.0, %v1973
        %v1975 = vpop.f32.mrf.mxu0
        %v1976 = vadd.f32 0.0, %v1975
        %1977 = vmatmul.bf16.gmra.mxu0 %v1941
        %v1978 = vpop.f32.mrf.mxu0
        %v1979 = vadd.f32 0.0, %v1978
        %v1980 = vpop.f32.mrf.mxu0
        %v1981 = vadd.f32 0.0, %v1980
        %1982 = vmatmul.bf16.gmra.mxu0 %v1944
        %v1983 = vpop.f32.mrf.mxu0
        %v1984 = vadd.f32 0.0, %v1983
        %v1985 = vpop.f32.mrf.mxu0
        %v1986 = vadd.f32 0.0, %v1985
        %1987 = vmatmul.bf16.gmra.mxu0 %v1947
        %v1988 = vpop.f32.mrf.mxu0
        %v1989 = vadd.f32 0.0, %v1988
        %v1990 = vpop.f32.mrf.mxu0
        %v1991 = vadd.f32 0.0, %v1990
        %1992 = vmatmul.bf16.gmra.mxu0 %v1950
        %v1993 = vpop.f32.mrf.mxu0
        %v1994 = vadd.f32 0.0, %v1993
        %v1995 = vpop.f32.mrf.mxu0
        %v1996 = vadd.f32 0.0, %v1995
        %1997 = vmatmul.bf16.gmra.mxu0 %v1953
        %v1998 = vpop.f32.mrf.mxu0
        %v1999 = vadd.f32 0.0, %v1998
        %v2000 = vpop.f32.mrf.mxu0
        %v2001 = vadd.f32 0.0, %v2000
        %2002 = vmatmul.bf16.gmra.mxu0 %v1956
        %v2003 = vpop.f32.mrf.mxu0
        %v2004 = vadd.f32 0.0, %v2003
        %v2005 = vpop.f32.mrf.mxu0
        %v2006 = vadd.f32 0.0, %v2005
        %2007 = vmatmul.bf16.gmra.mxu0 %v1959
        %v2008 = vpop.f32.mrf.mxu0
        %v2009 = vadd.f32 0.0, %v2008
        %v2010 = vpop.f32.mrf.mxu0
        %v2011 = vadd.f32 0.0, %v2010
        %2012 = vdwg.mxu0
        %v2013 = vadd.f32 %v1679, %v1974
        %v2014 = vadd.f32 %v1680, %v1976
        %v2015 = vadd.f32 %v1681, %v1979
        %v2016 = vadd.f32 %v1682, %v1981
        %v2017 = vadd.f32 %v1683, %v1984
        %v2018 = vadd.f32 %v1684, %v1986
        %v2019 = vadd.f32 %v1685, %v1989
        %v2020 = vadd.f32 %v1686, %v1991
        %v2021 = vadd.f32 %v1687, %v1994
        %v2022 = vadd.f32 %v1688, %v1996
        %v2023 = vadd.f32 %v1689, %v1999
        %v2024 = vadd.f32 %v1690, %v2001
        %v2025 = vadd.f32 %v1691, %v2004
        %v2026 = vadd.f32 %v1692, %v2006
        %v2027 = vadd.f32 %v1693, %v2009
        %v2028 = vadd.f32 %v1694, %v2011
        %v2029 = vld [vmem:[%s1544] sm:$0xe]
        %v2030 = vld [vmem:[%s1544 + $0xc] sm:$0xe]
        %v2031 = vld [vmem:[%s1544 + $0x18] sm:$0xe]
        %v2032 = vld [vmem:[%s1544 + $0x24] sm:$0xe]
        %v2033 = vld [vmem:[%s1544 + $0x30] sm:$0xe]
        %v2034 = vld [vmem:[%s1544 + $0x3c] sm:$0xe]
        %v2035 = vld [vmem:[%s1544 + $0x48] sm:$0xe]
        %v2036 = vld [vmem:[%s1544 + $0x54] sm:$0xe]
        %v2061 = vrot.slane %v2029, 5
        %v2062 = vrot.slane %v2061, 4
        %v2063 = vrot.slane %v1696, 5
        %v2064 = vsel %vm672, %v2062, %v2063
        %v2065 = vrot.slane %v2063, 4
        %v2066 = vrot.slane %v1697, 5
        %v2067 = vsel %vm672, %v2065, %v2066
        %v2068 = vrot.slane %v2030, 5
        %v2069 = vrot.slane %v2068, 4
        %v2070 = vrot.slane %v1699, 5
        %v2071 = vsel %vm672, %v2069, %v2070
        %v2072 = vrot.slane %v2070, 4
        %v2073 = vrot.slane %v1700, 5
        %v2074 = vsel %vm672, %v2072, %v2073
        %v2075 = vrot.slane %v2031, 5
        %v2076 = vrot.slane %v2075, 4
        %v2077 = vrot.slane %v1702, 5
        %v2078 = vsel %vm672, %v2076, %v2077
        %v2079 = vrot.slane %v2077, 4
        %v2080 = vrot.slane %v1703, 5
        %v2081 = vsel %vm672, %v2079, %v2080
        %v2082 = vrot.slane %v2032, 5
        %v2083 = vrot.slane %v2082, 4
        %v2084 = vrot.slane %v1705, 5
        %v2085 = vsel %vm672, %v2083, %v2084
        %v2086 = vrot.slane %v2084, 4
        %v2087 = vrot.slane %v1706, 5
        %v2088 = vsel %vm672, %v2086, %v2087
        %v2089 = vrot.slane %v2033, 5
        %v2090 = vrot.slane %v2089, 4
        %v2091 = vrot.slane %v1708, 5
        %v2092 = vsel %vm672, %v2090, %v2091
        %v2093 = vrot.slane %v2091, 4
        %v2094 = vrot.slane %v1709, 5
        %v2095 = vsel %vm672, %v2093, %v2094
        %v2096 = vrot.slane %v2034, 5
        %v2097 = vrot.slane %v2096, 4
        %v2098 = vrot.slane %v1711, 5
        %v2099 = vsel %vm672, %v2097, %v2098
        %v2100 = vrot.slane %v2098, 4
        %v2101 = vrot.slane %v1712, 5
        %v2102 = vsel %vm672, %v2100, %v2101
        %v2103 = vrot.slane %v2035, 5
        %v2104 = vrot.slane %v2103, 4
        %v2105 = vrot.slane %v1714, 5
        %v2106 = vsel %vm672, %v2104, %v2105
        %v2107 = vrot.slane %v2105, 4
        %v2108 = vrot.slane %v1715, 5
        %v2109 = vsel %vm672, %v2107, %v2108
        %v2110 = vrot.slane %v2036, 5
        %v2111 = vrot.slane %v2110, 4
        %v2112 = vrot.slane %v1717, 5
        %v2113 = vsel %vm672, %v2111, %v2112
        %v2114 = vrot.slane %v2112, 4
        %v2115 = vrot.slane %v1718, 5
        %v2116 = vsel %vm672, %v2114, %v2115
        %s2117 = scalar_lea.vmem %s1, 16
        %v2118 = vld [vmem:[%s2117] sm:$0x3]
        %v2119 = vunpack.c.l.b16 %v2064
        %v2120 = vunpack.c.l.b16 %v2067
        %v2121 = vunpack.c.l.b16 %v2071
        %v2122 = vunpack.c.l.b16 %v2074
        %v2123 = vunpack.c.l.b16 %v2078
        %v2124 = vunpack.c.l.b16 %v2081
        %v2125 = vunpack.c.l.b16 %v2085
        %v2126 = vunpack.c.l.b16 %v2088
        %v2127 = vunpack.c.l.b16 %v2092
        %v2128 = vunpack.c.l.b16 %v2095
        %v2129 = vunpack.c.l.b16 %v2099
        %v2130 = vunpack.c.l.b16 %v2102
        %v2131 = vunpack.c.l.b16 %v2106
        %v2132 = vunpack.c.l.b16 %v2109
        %v2133 = vunpack.c.l.b16 %v2113
        %v2134 = vunpack.c.l.b16 %v2116
        %v2135 = vpack.c.b16 %v2120, %v2119
        %v2136 = vpack.c.b16 %v2122, %v2121
        %v2137 = vpack.c.b16 %v2124, %v2123
        %v2138 = vpack.c.b16 %v2126, %v2125
        %v2139 = vpack.c.b16 %v2128, %v2127
        %v2140 = vpack.c.b16 %v2130, %v2129
        %v2141 = vpack.c.b16 %v2132, %v2131
        %v2142 = vpack.c.b16 %v2134, %v2133
        %v2144 = vsel %vm452, %v2135, 0
        %v2147 = vsel %vm452, %v2136, 0
        %v2150 = vsel %vm452, %v2137, 0
        %v2153 = vsel %vm452, %v2138, 0
        %v2156 = vsel %vm452, %v2139, 0
        %v2159 = vsel %vm452, %v2140, 0
        %v2162 = vsel %vm452, %v2141, 0
        %v2165 = vsel %vm452, %v2142, 0
        %v2168 = vsel %vm477, %v2118, 0
        %2170 = vmatpush.bf16.msra.mxu0 0
        %2171 = vmatpush.bf16.msra.mxu0 0
        %2172 = vmatpush.bf16.msra.mxu0 0
        %2173 = vmatpush.bf16.msra.mxu0 0
        %2174 = vmatpush.bf16.msra.mxu0 0
        %2175 = vmatpush.bf16.msra.mxu0 0
        %2176 = vmatpush.bf16.msra.mxu0 0
        %2177 = vmatpush.bf16.msra.mxu0 %v2168
        %2178 = vmatmul.bf16.gmra.mxu0 %v2144
        %v2179 = vpop.f32.mrf.mxu0
        %v2180 = vadd.f32 0.0, %v2179
        %v2181 = vpop.f32.mrf.mxu0
        %v2182 = vadd.f32 0.0, %v2181
        %2183 = vmatmul.bf16.gmra.mxu0 %v2147
        %v2184 = vpop.f32.mrf.mxu0
        %v2185 = vadd.f32 0.0, %v2184
        %v2186 = vpop.f32.mrf.mxu0
        %v2187 = vadd.f32 0.0, %v2186
        %2188 = vmatmul.bf16.gmra.mxu0 %v2150
        %v2189 = vpop.f32.mrf.mxu0
        %v2190 = vadd.f32 0.0, %v2189
        %v2191 = vpop.f32.mrf.mxu0
        %v2192 = vadd.f32 0.0, %v2191
        %2193 = vmatmul.bf16.gmra.mxu0 %v2153
        %v2194 = vpop.f32.mrf.mxu0
        %v2195 = vadd.f32 0.0, %v2194
        %v2196 = vpop.f32.mrf.mxu0
        %v2197 = vadd.f32 0.0, %v2196
        %2198 = vmatmul.bf16.gmra.mxu0 %v2156
        %v2199 = vpop.f32.mrf.mxu0
        %v2200 = vadd.f32 0.0, %v2199
        %v2201 = vpop.f32.mrf.mxu0
        %v2202 = vadd.f32 0.0, %v2201
        %2203 = vmatmul.bf16.gmra.mxu0 %v2159
        %v2204 = vpop.f32.mrf.mxu0
        %v2205 = vadd.f32 0.0, %v2204
        %v2206 = vpop.f32.mrf.mxu0
        %v2207 = vadd.f32 0.0, %v2206
        %2208 = vmatmul.bf16.gmra.mxu0 %v2162
        %v2209 = vpop.f32.mrf.mxu0
        %v2210 = vadd.f32 0.0, %v2209
        %v2211 = vpop.f32.mrf.mxu0
        %v2212 = vadd.f32 0.0, %v2211
        %2213 = vmatmul.bf16.gmra.mxu0 %v2165
        %v2214 = vpop.f32.mrf.mxu0
        %v2215 = vadd.f32 0.0, %v2214
        %v2216 = vpop.f32.mrf.mxu0
        %v2217 = vadd.f32 0.0, %v2216
        %2218 = vdwg.mxu0
        %v2219 = vadd.f32 %v2013, %v2180
        %v2220 = vadd.f32 %v2014, %v2182
        %v2221 = vadd.f32 %v2015, %v2185
        %v2222 = vadd.f32 %v2016, %v2187
        %v2223 = vadd.f32 %v2017, %v2190
        %v2224 = vadd.f32 %v2018, %v2192
        %v2225 = vadd.f32 %v2019, %v2195
        %v2226 = vadd.f32 %v2020, %v2197
        %v2227 = vadd.f32 %v2021, %v2200
        %v2228 = vadd.f32 %v2022, %v2202
        %v2229 = vadd.f32 %v2023, %v2205
        %v2230 = vadd.f32 %v2024, %v2207
        %v2231 = vadd.f32 %v2025, %v2210
        %v2232 = vadd.f32 %v2026, %v2212
        %v2233 = vadd.f32 %v2027, %v2215
        %v2234 = vadd.f32 %v2028, %v2217
        %v2235 = vpack.c.bf16 %v2219, %v2219
        %v2236 = vpack.c.bf16 %v2220, %v2220
        %v2237 = vpack.c.bf16 %v2221, %v2221
        %v2238 = vpack.c.bf16 %v2222, %v2222
        %v2239 = vpack.c.bf16 %v2223, %v2223
        %v2240 = vpack.c.bf16 %v2224, %v2224
        %v2241 = vpack.c.bf16 %v2225, %v2225
        %v2242 = vpack.c.bf16 %v2226, %v2226
        %v2243 = vpack.c.bf16 %v2227, %v2227
        %v2244 = vpack.c.bf16 %v2228, %v2228
        %v2245 = vpack.c.bf16 %v2229, %v2229
        %v2246 = vpack.c.bf16 %v2230, %v2230
        %v2247 = vpack.c.bf16 %v2231, %v2231
        %v2248 = vpack.c.bf16 %v2232, %v2232
        %v2249 = vpack.c.bf16 %v2233, %v2233
        %v2250 = vpack.c.bf16 %v2234, %v2234
        %2251 = vst [vmem:[%s185] sm:$0xf] %v2235
        %2252 = vst [vmem:[%s185 + $0x4] sm:$0xf] %v2236
        %2253 = vst [vmem:[%s185 + $0x8] sm:$0xf] %v2237
        %2254 = vst [vmem:[%s185 + $0xc] sm:$0xf] %v2238
        %2255 = vst [vmem:[%s185 + $0x10] sm:$0xf] %v2239
        %2256 = vst [vmem:[%s185 + $0x14] sm:$0xf] %v2240
        %2257 = vst [vmem:[%s185 + $0x18] sm:$0xf] %v2241
        %2258 = vst [vmem:[%s185 + $0x1c] sm:$0xf] %v2242
        %2259 = vst [vmem:[%s185 + $0x20] sm:$0xf] %v2243
        %2260 = vst [vmem:[%s185 + $0x24] sm:$0xf] %v2244
        %2261 = vst [vmem:[%s185 + $0x28] sm:$0xf] %v2245
        %2262 = vst [vmem:[%s185 + $0x2c] sm:$0xf] %v2246
        %2263 = vst [vmem:[%s185 + $0x30] sm:$0xf] %v2247
        %2264 = vst [vmem:[%s185 + $0x34] sm:$0xf] %v2248
        %2265 = vst [vmem:[%s185 + $0x38] sm:$0xf] %v2249
        %2266 = vst [vmem:[%s185 + $0x3c] sm:$0xf] %v2250
        %v2267 = vadd.f32 %v2219, %v2220
        %v2268 = vadd.f32 %v2267, %v2221
        %v2269 = vadd.f32 %v2268, %v2222
        %v2270 = vadd.f32 %v2269, %v2223
        %v2271 = vadd.f32 %v2270, %v2224
        %v2272 = vadd.f32 %v2271, %v2225
        %v2273 = vadd.f32 %v2272, %v2226
        %v2274 = vadd.f32 %v2273, %v2227
        %v2275 = vadd.f32 %v2274, %v2228
        %v2276 = vadd.f32 %v2275, %v2229
        %v2277 = vadd.f32 %v2276, %v2230
        %v2278 = vadd.f32 %v2277, %v2231
        %v2279 = vadd.f32 %v2278, %v2232
        %v2280 = vadd.f32 %v2279, %v2233
        %v2281 = vadd.f32 %v2280, %v2234
        %v2282 = vrot.slane %v2281, 4
        %v2283 = vadd.f32 %v2281, %v2282
        %v2284 = vrot.slane %v2283, 2
        %v2285 = vadd.f32 %v2283, %v2284
        %v2286 = vrot.slane %v2285, 1
        %v2287 = vadd.f32 %v2285, %v2286
        %v2288 = vmul.f32 %v2287, 0.0078125
        %v2289 = vsub.f32 %v2219, %v2288
        %v2290 = vsub.f32 %v2220, %v2288
        %v2291 = vsub.f32 %v2221, %v2288
        %v2292 = vsub.f32 %v2222, %v2288
        %v2293 = vsub.f32 %v2223, %v2288
        %v2294 = vsub.f32 %v2224, %v2288
        %v2295 = vsub.f32 %v2225, %v2288
        %v2296 = vsub.f32 %v2226, %v2288
        %v2297 = vsub.f32 %v2227, %v2288
        %v2298 = vsub.f32 %v2228, %v2288
        %v2299 = vsub.f32 %v2229, %v2288
        %v2300 = vsub.f32 %v2230, %v2288
        %v2301 = vsub.f32 %v2231, %v2288
        %v2302 = vsub.f32 %v2232, %v2288
        %v2303 = vsub.f32 %v2233, %v2288
        %v2304 = vsub.f32 %v2234, %v2288
        %2305 = vst [vmem:[%s192] sm:$0x1] %v2287
        %v2306 = vmul.f32 %v2289, %v2289
        %v2307 = vmul.f32 %v2290, %v2290
        %v2308 = vmul.f32 %v2291, %v2291
        %v2309 = vmul.f32 %v2292, %v2292
        %v2310 = vmul.f32 %v2293, %v2293
        %v2311 = vmul.f32 %v2294, %v2294
        %v2312 = vmul.f32 %v2295, %v2295
        %v2313 = vmul.f32 %v2296, %v2296
        %v2314 = vmul.f32 %v2297, %v2297
        %v2315 = vmul.f32 %v2298, %v2298
        %v2316 = vmul.f32 %v2299, %v2299
        %v2317 = vmul.f32 %v2300, %v2300
        %v2318 = vmul.f32 %v2301, %v2301
        %v2319 = vmul.f32 %v2302, %v2302
        %v2320 = vmul.f32 %v2303, %v2303
        %v2321 = vmul.f32 %v2304, %v2304
        %v2322 = vadd.f32 %v2306, %v2307
        %v2323 = vadd.f32 %v2322, %v2308
        %v2324 = vadd.f32 %v2323, %v2309
        %v2325 = vadd.f32 %v2324, %v2310
        %v2326 = vadd.f32 %v2325, %v2311
        %v2327 = vadd.f32 %v2326, %v2312
        %v2328 = vadd.f32 %v2327, %v2313
        %v2329 = vadd.f32 %v2328, %v2314
        %v2330 = vadd.f32 %v2329, %v2315
        %v2331 = vadd.f32 %v2330, %v2316
        %v2332 = vadd.f32 %v2331, %v2317
        %v2333 = vadd.f32 %v2332, %v2318
        %v2334 = vadd.f32 %v2333, %v2319
        %v2335 = vadd.f32 %v2334, %v2320
        %v2336 = vadd.f32 %v2335, %v2321
        %v2337 = vrot.slane %v2336, 4
        %v2338 = vadd.f32 %v2336, %v2337
        %v2339 = vrot.slane %v2338, 2
        %v2340 = vadd.f32 %v2338, %v2339
        %v2341 = vrot.slane %v2340, 1
        %v2342 = vadd.f32 %v2340, %v2341
        %2343 = vst [vmem:[%s192 + $0x1] sm:$0x1] %v2342
        %s2344 = sand.u32 %s90, 1
        %s2345 = scalar_lea.sflag [#allocation3], %s2344
        %s2346 = sand.u32 %s90, 1
        %s2347 = smul.addr %s2346, 64
        %s2348 = scalar_lea.vmem [#allocation2], %s2347
        %s2349 = sand.u32 %s120, 1
        %s2350 = scalar_lea.sflag [#allocation5], %s2349
        %s2351 = sand.u32 %s120, 1
        %s2352 = smul.addr %s2351, 2
        %s2353 = scalar_lea.vmem [#allocation4], %s2352
        // Predicated region
        $region29: #{tpu_custom_call.1} parent=27 // pred_check
          %p2354 = pneg %p100
        $region30: #{tpu_custom_call.1} parent=27 // pred_check_branch
          %2356 = sbr.rel (%p2354) target = $region32
        $region31: #{tpu_custom_call.1} parent=27 // pred_region
          %s2357 = smul.u32 8, %s26
          %2359 = vsyncadd %s2345, 0
          %s2360 = smul.addr %s2357, 2
          %s2361 = smul.addr %s25, 32
          %s2362 = sadd.s32 %s2360, %s2361
          %s2363 = smul.addr %s2362, 4
          %s2364 = scalar_lea.hbm %s2, %s2363
          %s2365 = sshll.u32 %s2348, 4
          %s2366 = int_to_ptr.vmem [resolvable:$true] %s2365
          %s2367 = sshll.u32 %s2364, 4
          %s2368 = int_to_ptr.hbm [resolvable:$true] %s2367
          %2373 = dma.vmem_to_hbm [thread:$0]  %s2366, 1024, %s2368, %s2345, 64, 64, 4
        $region32: #{tpu_custom_call.1} parent=27 // pred_fallthru
          _
        // Predicated region
        $region33: #{tpu_custom_call.1} parent=27 // pred_check
          %p2374 = pneg %p130
        $region34: #{tpu_custom_call.1} parent=27 // pred_check_branch
          %2376 = sbr.rel (%p2374) target = $region36
        $region35: #{tpu_custom_call.1} parent=27 // pred_region
          %s2377 = smul.u32 %s25, 2
          %s2378 = sadd.s32 %s2377, %s26
          %2380 = vsyncadd %s2350, 0
          %s2381 = smul.addr %s2378, 2
          %s2382 = scalar_lea.hbm %s3, %s2381
          %s2384 = sshll.u32 %s2353, 4
          %s2385 = int_to_ptr.vmem [resolvable:$true] %s2384
          %s2386 = sshll.u32 %s2382, 4
          %s2387 = int_to_ptr.hbm [resolvable:$true] %s2386
          %2389 = dma.vmem_to_hbm [thread:$0]  %s2385, 32, %s2387, %s2350
        $region36: #{tpu_custom_call.1} parent=27 // pred_fallthru
          _
      $region28: #{tpu_custom_call.1} parent=5 // pred_fallthru
        _
      %p2390 = scmp.le.s32.totalorder 2, %s16
      // Predicated region
      $region37: #{tpu_custom_call.1} parent=5 // pred_check
        %p2391 = pneg %p2390
      $region38: #{tpu_custom_call.1} parent=5 // pred_check_branch
        %2393 = sbr.rel (%p2391) target = $region40
      $region39: #{tpu_custom_call.1} parent=5 // pred_region
        %s2394 = ssub.s32 %s16, 2
        // Predicated region
        $region41: #{tpu_custom_call.1} parent=39 // pred_check
          %p2395 = pneg %p106
        $region42: #{tpu_custom_call.1} parent=39 // pred_check_branch
          %2397 = sbr.rel (%p2395) target = $region44
        $region43: #{tpu_custom_call.1} parent=39 // pred_region
          %s2398 = sand.u32 %s91, 1
          %s2399 = scalar_lea.sflag [#allocation3], %s2398
          %s2400 = sand.u32 %s91, 1
          %s2401 = smul.addr %s2400, 64
          %s2402 = scalar_lea.vmem [#allocation2], %s2401
          %2404 = dma.done %s2399, 1024
        $region44: #{tpu_custom_call.1} parent=39 // pred_fallthru
          _
        // Predicated region
        $region45: #{tpu_custom_call.1} parent=39 // pred_check
          %p2405 = pneg %p136
        $region46: #{tpu_custom_call.1} parent=39 // pred_check_branch
          %2407 = sbr.rel (%p2405) target = $region48
        $region47: #{tpu_custom_call.1} parent=39 // pred_region
          %s2408 = sand.u32 %s121, 1
          %s2409 = scalar_lea.sflag [#allocation5], %s2408
          %s2410 = sand.u32 %s121, 1
          %s2411 = smul.addr %s2410, 2
          %s2412 = scalar_lea.vmem [#allocation4], %s2411
          %2414 = dma.done %s2409, 32
        $region48: #{tpu_custom_call.1} parent=39 // pred_fallthru
          _
      $region40: #{tpu_custom_call.1} parent=5 // pred_fallthru
        _
    $region6: #{tpu_custom_call.1} parent=1 // loop_footer
      %s20 = sadd.s32 1, %s16
    $region7: #{tpu_custom_call.1} parent=1 // loop_footer_branch
      %15 = sbr.rel target = $region3
    $region8: #{tpu_custom_call.1} parent=1 // loop_exit
      _
    %2415 = vsyncpa [#allocation3], 1
    %s2416 = scalar_lea.sflag [#allocation3], 1
    %2417 = vsyncpa %s2416, 1
    %2418 = vsyncpa [#allocation5], 1
    %s2419 = scalar_lea.sflag [#allocation5], 1
    %2420 = vsyncpa %s2419, 1

</llo_original>
